<compile_context>
chip_gen: v6e
topology: v6e:2x2x1
jax: 0.10.0
libtpu: 0.0.40
codegen_flags: <defaults>
</compile_context>

<pallas_src>
import math

import jax
import jax.numpy as jnp
from jax import lax
from jax.experimental import pallas as pl
from jax.experimental.pallas import tpu as pltpu

# ----------------------------------------------------------------------------
# Small synthetic configuration (DINO ViT-style, scaled down)
# ----------------------------------------------------------------------------
BATCH = 4
CHANNELS = 3
IMG = 16
PATCH = 8
GRID_HW = IMG // PATCH               # 2
NUM_PATCHES = GRID_HW * GRID_HW      # 4
TOKENS = NUM_PATCHES + 1             # 5  (CLS + patches)
HIDDEN = 32
NUM_HEADS = 2
HEAD_DIM = HIDDEN // NUM_HEADS       # 16
INTERMEDIATE = 64
NUM_LAYERS = 2
LN_EPS = 1e-12                       # HF ViT default layer_norm_eps
IMAGENET_MEAN = (0.485, 0.456, 0.406)
IMAGENET_STD = (0.229, 0.224, 0.225)

# Padded / tile dims (lane-dense blocks everywhere).
D_PAD = 128                          # hidden padded to one lane group
I_PAD = 128                          # intermediate padded
CPP = CHANNELS * PATCH * PATCH       # 192
CPP_PAD = 256                        # patch-embed contraction padded to 128-multiple
T_PAD = 8                            # tokens padded to a sublane multiple
IMAGES_PER_BLOCK = 2                 # images folded into one grid block (raises M)
assert BATCH % IMAGES_PER_BLOCK == 0


# ----------------------------------------------------------------------------
# In-kernel math helpers (pure jnp; traced inside the Pallas kernel body)
# ----------------------------------------------------------------------------
def _gelu_exact(x):
    # HF "gelu": 0.5*x*(1+erf(x/sqrt(2))). erf via Abramowitz & Stegun 7.1.26
    # (|err| <= 1.5e-7). The inner 1/(1+p*|z|) uses an EUP approx reciprocal
    # plus one Newton step (~f32-exact); exp runs on the EUP.
    # gelu(0) == 0 exactly, so zero-padded lanes stay zero.
    z = x * 0.7071067811865476
    az = jnp.abs(z)
    den = 1.0 + 0.3275911 * az
    t = pl.reciprocal(den, approx=True)
    t = t * (2.0 - den * t)                      # Newton refine
    a1, a2, a3, a4, a5 = (0.254829592, -0.284496736, 1.421413741,
                          -1.453152027, 1.061405429)
    poly = ((((a5 * t + a4) * t + a3) * t + a2) * t + a1) * t
    erf_abs = 1.0 - poly * jnp.exp(-az * az)
    erf_z = jnp.where(z < 0.0, -erf_abs, erf_abs)
    return 0.5 * x * (1.0 + erf_z)


def _layer_norm(x, gamma, beta, lane_mask):
    # Statistics over the real HIDDEN lanes only; padded lanes of x are zero
    # (so the plain sum is exact) and gamma/beta are zero there, so the output
    # stays zero-padded.  All in f32.
    mu = jnp.sum(x, axis=-1, keepdims=True) * (1.0 / HIDDEN)
    d = (x - mu) * lane_mask
    var = jnp.sum(d * d, axis=-1, keepdims=True) * (1.0 / HIDDEN)
    return d * lax.rsqrt(var + LN_EPS) * gamma + beta


# ----------------------------------------------------------------------------
# Fused forward kernel.  grid = (batch_blocks, NUM_LAYERS):
#   axis 0 ("parallel")  : a block of IMAGES_PER_BLOCK images
#   axis 1 ("arbitrary") : transformer layer; activations live in x_scr (VMEM)
# Layer 0 additionally performs the patch embedding; the last layer applies
# the final LayerNorm and writes the output block.
# ----------------------------------------------------------------------------
def _dino_fwd_kernel(tok_in_ref, tok_add_ref, pw_ref,
                     ln1g_ref, ln1b_ref, wqkv_ref, bqkv_ref, wo_ref, bo_ref,
                     ln2g_ref, ln2b_ref, wi_ref, bi_ref, w2_ref, b2_ref,
                     flng_ref, flnb_ref, out_ref, x_scr):
    l = pl.program_id(1)
    n_img, t_pad, _ = out_ref.shape
    rows = n_img * t_pad

    # ---- layer 0: patch embed (ImageNet norm folded into pw; CLS/pos/conv
    #      bias folded into tok_add, broadcast over the images of the block).
    @pl.when(l == 0)
    def _():
        emb = jnp.dot(tok_in_ref[...].reshape(rows, CPP_PAD), pw_ref[...],
                      preferred_element_type=jnp.float32)
        emb = emb.reshape(n_img, t_pad, D_PAD) + tok_add_ref[...][None, :, :]
        x_scr[...] = emb

    x = x_scr[...].reshape(rows, D_PAD)                  # f32 residual stream

    # Hoisted constants.
    lane2 = lax.broadcasted_iota(jnp.int32, (rows, D_PAD), 1)
    ln_mask = (lane2 < HIDDEN).astype(jnp.float32)
    lane3 = lax.broadcasted_iota(jnp.int32, (n_img, t_pad, D_PAD), 2)
    key_col = lax.broadcasted_iota(jnp.int32, (t_pad, t_pad), 1)
    key_bias = jnp.where(key_col < TOKENS, 0.0, -1e30)[None, :, :]  # pad keys

    scale = 1.0 / math.sqrt(HEAD_DIM)

    # ----- self-attention (pre-LN), fused QKV projection -----
    h = _layer_norm(x, ln1g_ref[0], ln1b_ref[0], ln_mask)
    qkv = jnp.dot(h.astype(jnp.bfloat16), wqkv_ref[0],
                  preferred_element_type=jnp.float32) + bqkv_ref[0]
    qf = qkv[:, 0 * D_PAD:1 * D_PAD].reshape(n_img, t_pad, D_PAD)          # f32
    kb = qkv[:, 1 * D_PAD:2 * D_PAD].reshape(n_img, t_pad, D_PAD).astype(jnp.bfloat16)
    vb = qkv[:, 2 * D_PAD:3 * D_PAD].reshape(n_img, t_pad, D_PAD).astype(jnp.bfloat16)

    ctx = jnp.zeros((n_img, t_pad, D_PAD), jnp.float32)
    for hh in range(NUM_HEADS):                          # lane masks, no lane slicing
        hmask = ((lane3 >= hh * HEAD_DIM) &
                 (lane3 < (hh + 1) * HEAD_DIM)).astype(jnp.float32)
        qh = (qf * hmask).astype(jnp.bfloat16)           # only Q is head-masked
        s = jnp.einsum('bqd,bkd->bqk', qh, kb,
                       preferred_element_type=jnp.float32) * scale + key_bias
        s = s - jnp.max(s, axis=-1, keepdims=True)
        p = jnp.exp(s)
        p = p / jnp.sum(p, axis=-1, keepdims=True)       # exact softmax normalization
        part = jnp.einsum('bqk,bkd->bqd', p.astype(jnp.bfloat16), vb,
                          preferred_element_type=jnp.float32)
        ctx = ctx + part * hmask                         # heads -> disjoint lane ranges

    attn = jnp.dot(ctx.reshape(rows, D_PAD).astype(jnp.bfloat16), wo_ref[0],
                   preferred_element_type=jnp.float32) + bo_ref[0]
    x = x + attn

    # ----- MLP (pre-LN) -----
    h2 = _layer_norm(x, ln2g_ref[0], ln2b_ref[0], ln_mask)
    inter = _gelu_exact(jnp.dot(h2.astype(jnp.bfloat16), wi_ref[0],
                                preferred_element_type=jnp.float32) + bi_ref[0])
    x = x + jnp.dot(inter.astype(jnp.bfloat16), w2_ref[0],
                    preferred_element_type=jnp.float32) + b2_ref[0]

    x_scr[...] = x.reshape(n_img, t_pad, D_PAD)

    # ---- last layer: final LayerNorm -> last_hidden_state block
    @pl.when(l == NUM_LAYERS - 1)
    def _():
        y = _layer_norm(x, flng_ref[...], flnb_ref[...], ln_mask)
        out_ref[...] = y.reshape(n_img, t_pad, D_PAD)


# ----------------------------------------------------------------------------
# Parameters (deterministic synthetic init; no checkpoint loading)
# ----------------------------------------------------------------------------
def _pad_to(x, shape, dtype=jnp.float32):
    out = jnp.zeros(shape, jnp.float32)
    out = out.at[tuple(slice(0, s) for s in x.shape)].set(x.astype(jnp.float32))
    return out.astype(dtype)


def init_params(key):
    std = 0.02
    keys = jax.random.split(key, 3 + NUM_LAYERS)

    conv_w = jax.random.normal(keys[0], (HIDDEN, CHANNELS, PATCH, PATCH),
                               jnp.float32) * std
    conv_b = jnp.zeros((HIDDEN,), jnp.float32)
    cls = jax.random.normal(keys[1], (1, 1, HIDDEN), jnp.float32) * std
    pos = jax.random.normal(keys[2], (1, TOKENS, HIDDEN), jnp.float32) * std

    # Fold the processor's (x - mean) / std per-channel normalization into the
    # (linear) patch-embedding conv: exact, free at init time.
    mean = jnp.asarray(IMAGENET_MEAN, jnp.float32).reshape(1, CHANNELS, 1, 1)
    stdv = jnp.asarray(IMAGENET_STD, jnp.float32).reshape(1, CHANNELS, 1, 1)
    w_eff = conv_w / stdv                                             # (D, C, P, P)
    b_eff = conv_b - jnp.sum(conv_w * (mean / stdv), axis=(1, 2, 3))  # (D,)

    params = {}
    # bf16 matmul weights, f32 biases / LN params / additive terms.
    params["patch_w"] = _pad_to(w_eff.reshape(HIDDEN, CPP).T, (CPP_PAD, D_PAD),
                                jnp.bfloat16)
    tok_add = jnp.concatenate(
        [(cls[0, 0] + pos[0, 0])[None, :], b_eff[None, :] + pos[0, 1:]], axis=0)
    params["tok_add"] = _pad_to(tok_add, (T_PAD, D_PAD))
    params["final_ln_g"] = _pad_to(jnp.ones((1, HIDDEN), jnp.float32), (1, D_PAD))
    params["final_ln_b"] = jnp.zeros((1, D_PAD), jnp.float32)

    stacked = {k: [] for k in ("ln1_g", "ln1_b", "wqkv", "bqkv", "wo", "bo",
                               "ln2_g", "ln2_b", "wi", "bi", "w2", "b2")}
    for li in range(NUM_LAYERS):
        lk = jax.random.split(keys[3 + li], 6)
        wq = jax.random.normal(lk[0], (HIDDEN, HIDDEN), jnp.float32) * std
        wk = jax.random.normal(lk[1], (HIDDEN, HIDDEN), jnp.float32) * std
        wv = jax.random.normal(lk[2], (HIDDEN, HIDDEN), jnp.float32) * std
        wqkv = jnp.concatenate([_pad_to(wq, (D_PAD, D_PAD)),
                                _pad_to(wk, (D_PAD, D_PAD)),
                                _pad_to(wv, (D_PAD, D_PAD))], axis=1)
        stacked["ln1_g"].append(_pad_to(jnp.ones((1, HIDDEN), jnp.float32), (1, D_PAD)))
        stacked["ln1_b"].append(jnp.zeros((1, D_PAD), jnp.float32))
        stacked["wqkv"].append(wqkv.astype(jnp.bfloat16))
        stacked["bqkv"].append(jnp.zeros((1, 3 * D_PAD), jnp.float32))
        stacked["wo"].append(_pad_to(
            jax.random.normal(lk[3], (HIDDEN, HIDDEN), jnp.float32) * std,
            (D_PAD, D_PAD), jnp.bfloat16))
        stacked["bo"].append(jnp.zeros((1, D_PAD), jnp.float32))
        stacked["ln2_g"].append(_pad_to(jnp.ones((1, HIDDEN), jnp.float32), (1, D_PAD)))
        stacked["ln2_b"].append(jnp.zeros((1, D_PAD), jnp.float32))
        stacked["wi"].append(_pad_to(
            jax.random.normal(lk[4], (HIDDEN, INTERMEDIATE), jnp.float32) * std,
            (D_PAD, I_PAD), jnp.bfloat16))
        stacked["bi"].append(jnp.zeros((1, I_PAD), jnp.float32))
        stacked["w2"].append(_pad_to(
            jax.random.normal(lk[5], (INTERMEDIATE, HIDDEN), jnp.float32) * std,
            (I_PAD, D_PAD), jnp.bfloat16))
        stacked["b2"].append(jnp.zeros((1, D_PAD), jnp.float32))

    for k, v in stacked.items():
        params[k] = jnp.stack(v, axis=0)                 # leading NUM_LAYERS axis
    return params


# ----------------------------------------------------------------------------
# Full forward (layout plumbing in JAX, all compute in one Pallas kernel)
# ----------------------------------------------------------------------------
@jax.jit
def dino_wrapper_forward(image, params):
    # image: NCHW float32 in [0, 1] (do_rescale=False, do_resize=False).
    # Normalization is pre-folded into the patch-embed parameters.
    b = image.shape[0]

    # Conv2d(kernel=P, stride=P) == per-patch matmul: extract non-overlapping
    # patches, flattened in (C, P, P) order to match the PyTorch conv weight.
    patches = image.reshape(b, CHANNELS, GRID_HW, PATCH, GRID_HW, PATCH)
    patches = patches.transpose(0, 2, 4, 1, 3, 5).reshape(b, NUM_PATCHES, CPP)

    # Token matrix per image: row 0 (CLS) and padding rows/columns are zero;
    # the CLS value comes entirely from tok_add (cls + pos), patch rows get
    # folded conv-bias + pos there too.
    tok_in = jnp.zeros((b, T_PAD, CPP_PAD), jnp.float32)
    tok_in = tok_in.at[:, 1:1 + NUM_PATCHES, :CPP].set(patches)
    tok_in = tok_in.astype(jnp.bfloat16)

    grid = (b // IMAGES_PER_BLOCK, NUM_LAYERS)

    img_map = lambda bi, li: (bi, 0, 0)      # per-image-block operands
    layer_map = lambda bi, li: (li, 0, 0)    # per-layer weight slabs
    const_map = lambda bi, li: (0, 0)        # shared small constants

    in_specs = [
        pl.BlockSpec((IMAGES_PER_BLOCK, T_PAD, CPP_PAD), img_map),   # tok_in
        pl.BlockSpec((T_PAD, D_PAD), const_map),                     # tok_add (not tiled per batch)
        pl.BlockSpec((CPP_PAD, D_PAD), const_map),                   # patch_w
        pl.BlockSpec((1, 1, D_PAD), layer_map),                      # ln1_g
        pl.BlockSpec((1, 1, D_PAD), layer_map),                      # ln1_b
        pl.BlockSpec((1, D_PAD, 3 * D_PAD), layer_map),              # wqkv (fused)
        pl.BlockSpec((1, 1, 3 * D_PAD), layer_map),                  # bqkv
        pl.BlockSpec((1, D_PAD, D_PAD), layer_map),                  # wo
        pl.BlockSpec((1, 1, D_PAD), layer_map),                      # bo
        pl.BlockSpec((1, 1, D_PAD), layer_map),                      # ln2_g
        pl.BlockSpec((1, 1, D_PAD), layer_map),                      # ln2_b
        pl.BlockSpec((1, D_PAD, I_PAD), layer_map),                  # wi
        pl.BlockSpec((1, 1, I_PAD), layer_map),                      # bi
        pl.BlockSpec((1, I_PAD, D_PAD), layer_map),                  # w2
        pl.BlockSpec((1, 1, D_PAD), layer_map),                      # b2
        pl.BlockSpec((1, D_PAD), const_map),                         # final_ln_g
        pl.BlockSpec((1, D_PAD), const_map),                         # final_ln_b
    ]
    operands = (tok_in, params["tok_add"], params["patch_w"],
                params["ln1_g"], params["ln1_b"], params["wqkv"], params["bqkv"],
                params["wo"], params["bo"], params["ln2_g"], params["ln2_b"],
                params["wi"], params["bi"], params["w2"], params["b2"],
                params["final_ln_g"], params["final_ln_b"])

    # NOTE: at real DINO-B sizes set vmem_limit_bytes explicitly (budget two
    # double-buffered layer slabs for v7x's 64 MiB); unnecessary at toy sizes.
    out = pl.pallas_call(
        _dino_fwd_kernel,
        out_shape=jax.ShapeDtypeStruct((b, T_PAD, D_PAD), jnp.float32),
        grid_spec=pltpu.PrefetchScalarGridSpec(
            num_scalar_prefetch=0,
            grid=grid,
            in_specs=in_specs,
            out_specs=pl.BlockSpec((IMAGES_PER_BLOCK, T_PAD, D_PAD), img_map),
            scratch_shapes=[pltpu.VMEM((IMAGES_PER_BLOCK, T_PAD, D_PAD),
                                       jnp.float32)],
        ),
        compiler_params=pltpu.CompilerParams(
            dimension_semantics=("parallel", "arbitrary")),
    )(*operands)

    # interpolate_pos_encoding=True: the position table already matches this
    # patch grid, so the bicubic interpolation reduces to the identity.
    # TODO(synk): general bicubic pos-embedding resize for mismatched grids is
    # parameter preprocessing, not kernel compute, and is left out here.
    return out[:, :TOKENS, :HIDDEN]


if __name__ == "__main__":
    key = jax.random.PRNGKey(0)
    pkey, ikey = jax.random.split(key)
    params = init_params(pkey)
    image = jax.random.uniform(ikey, (BATCH, CHANNELS, IMG, IMG), jnp.float32)

    last_hidden_state = dino_wrapper_forward(image, params)
    jax.block_until_ready(last_hidden_state)

    assert last_hidden_state.shape == (BATCH, TOKENS, HIDDEN)
    assert last_hidden_state.dtype == jnp.float32
    assert bool(jnp.all(jnp.isfinite(last_hidden_state)))
    print("KERNEL_OK")
</pallas_src>

<mosaic_0001>
module attributes {stable_mosaic.version = 11 : i64} {
  func.func @_dino_fwd_kernel(%arg0: i32, %arg1: i32, %arg2: memref<2x8x256xbf16, #tpu.memory_space<vmem>>, %arg3: memref<8x128xf32, #tpu.memory_space<vmem>>, %arg4: memref<256x128xbf16, #tpu.memory_space<vmem>>, %arg5: memref<1x1x128xf32, #tpu.memory_space<vmem>>, %arg6: memref<1x1x128xf32, #tpu.memory_space<vmem>>, %arg7: memref<1x128x384xbf16, #tpu.memory_space<vmem>>, %arg8: memref<1x1x384xf32, #tpu.memory_space<vmem>>, %arg9: memref<1x128x128xbf16, #tpu.memory_space<vmem>>, %arg10: memref<1x1x128xf32, #tpu.memory_space<vmem>>, %arg11: memref<1x1x128xf32, #tpu.memory_space<vmem>>, %arg12: memref<1x1x128xf32, #tpu.memory_space<vmem>>, %arg13: memref<1x128x128xbf16, #tpu.memory_space<vmem>>, %arg14: memref<1x1x128xf32, #tpu.memory_space<vmem>>, %arg15: memref<1x128x128xbf16, #tpu.memory_space<vmem>>, %arg16: memref<1x1x128xf32, #tpu.memory_space<vmem>>, %arg17: memref<1x128xf32, #tpu.memory_space<vmem>>, %arg18: memref<1x128xf32, #tpu.memory_space<vmem>>, %arg19: memref<2x8x128xf32, #tpu.memory_space<vmem>>, %arg20: memref<2x8x128xf32, #tpu.memory_space<vmem>>) attributes {dimension_semantics = [#tpu.dimension_semantics<parallel>, #tpu.dimension_semantics<arbitrary>], iteration_bounds = array<i64: 2, 2>, scalar_prefetch = 0 : i64, scratch_operands = 1 : i64, tpu.core_type = #tpu.core_type<tc>, window_params = [{transform_indices = @transform_0, window_bounds = array<i64: 2, 8, 256>}, {pipeline_mode = #tpu.pipeline_mode<synchronous>, transform_indices = @transform_1, window_bounds = array<i64: 8, 128>}, {pipeline_mode = #tpu.pipeline_mode<synchronous>, transform_indices = @transform_2, window_bounds = array<i64: 256, 128>}, {transform_indices = @transform_3, window_bounds = array<i64: 1, 1, 128>}, {transform_indices = @transform_4, window_bounds = array<i64: 1, 1, 128>}, {transform_indices = @transform_5, window_bounds = array<i64: 1, 128, 384>}, {transform_indices = @transform_6, window_bounds = array<i64: 1, 1, 384>}, {transform_indices = @transform_7, window_bounds = array<i64: 1, 128, 128>}, {transform_indices = @transform_8, window_bounds = array<i64: 1, 1, 128>}, {transform_indices = @transform_9, window_bounds = array<i64: 1, 1, 128>}, {transform_indices = @transform_10, window_bounds = array<i64: 1, 1, 128>}, {transform_indices = @transform_11, window_bounds = array<i64: 1, 128, 128>}, {transform_indices = @transform_12, window_bounds = array<i64: 1, 1, 128>}, {transform_indices = @transform_13, window_bounds = array<i64: 1, 128, 128>}, {transform_indices = @transform_14, window_bounds = array<i64: 1, 1, 128>}, {pipeline_mode = #tpu.pipeline_mode<synchronous>, transform_indices = @transform_15, window_bounds = array<i64: 1, 128>}, {pipeline_mode = #tpu.pipeline_mode<synchronous>, transform_indices = @transform_16, window_bounds = array<i64: 1, 128>}, {transform_indices = @transform_17, window_bounds = array<i64: 2, 8, 128>}]} {
    %c0_i32 = arith.constant 0 : i32
    %0 = arith.cmpi eq, %arg1, %c0_i32 : i32
    %1 = arith.extui %0 : i1 to i32
    %c0_i32_0 = arith.constant 0 : i32
    %2 = arith.cmpi ne, %1, %c0_i32_0 : i32
    scf.if %2 {
      %c0_87 = arith.constant 0 : index
      %c0_88 = arith.constant 0 : index
      %c0_89 = arith.constant 0 : index
      %214 = vector.load %arg2[%c0_87, %c0_88, %c0_89] : memref<2x8x256xbf16, #tpu.memory_space<vmem>>, vector<2x8x256xbf16>
      %215 = vector.shape_cast %214 : vector<2x8x256xbf16> to vector<16x256xbf16>
      %c0_90 = arith.constant 0 : index
      %c0_91 = arith.constant 0 : index
      %216 = vector.load %arg4[%c0_90, %c0_91] : memref<256x128xbf16, #tpu.memory_space<vmem>>, vector<256x128xbf16>
      %cst_92 = arith.constant dense<0.000000e+00> : vector<16x128xf32>
      %217 = tpu.matmul %215, %216, %cst_92 {dimension_numbers = #tpu.dot_dimension_numbers<[1], [0], [0], [1], [0, 0, 1, 1], [], []>} : vector<16x256xbf16>, vector<256x128xbf16>, vector<16x128xf32> -> vector<16x128xf32>
      %218 = vector.shape_cast %217 : vector<16x128xf32> to vector<2x8x128xf32>
      %c0_93 = arith.constant 0 : index
      %c0_94 = arith.constant 0 : index
      %219 = vector.load %arg3[%c0_93, %c0_94] : memref<8x128xf32, #tpu.memory_space<vmem>>, vector<8x128xf32>
      %220 = vector.shape_cast %219 : vector<8x128xf32> to vector<1x8x128xf32>
      %221 = vector.broadcast %220 : vector<1x8x128xf32> to vector<2x8x128xf32>
      %222 = arith.addf %218, %221 : vector<2x8x128xf32>
      %c0_95 = arith.constant 0 : index
      %c0_96 = arith.constant 0 : index
      %c0_97 = arith.constant 0 : index
      %223 = vector.load %arg20[%c0_95, %c0_96, %c0_97] : memref<2x8x128xf32, #tpu.memory_space<vmem>>, vector<2x8x128xf32>
      tpu.vector_store %arg20[%c0_95, %c0_96, %c0_97], %222 {strides = array<i32>} : memref<2x8x128xf32, #tpu.memory_space<vmem>>, vector<2x8x128xf32>,
    } else {
    }
    %c0 = arith.constant 0 : index
    %c0_1 = arith.constant 0 : index
    %c0_2 = arith.constant 0 : index
    %3 = vector.load %arg20[%c0, %c0_1, %c0_2] : memref<2x8x128xf32, #tpu.memory_space<vmem>>, vector<2x8x128xf32>
    %4 = vector.shape_cast %3 : vector<2x8x128xf32> to vector<16x128xf32>
    %5 = tpu.iota {dimensions = array<i32: 1>} : vector<16x128xi32>
    %c32_i32 = arith.constant 32 : i32
    %6 = vector.broadcast %c32_i32 : i32 to vector<16x128xi32>
    %7 = arith.cmpi slt, %5, %6 : vector<16x128xi32>
    %8 = arith.extui %7 : vector<16x128xi1> to vector<16x128xi32>
    %9 = arith.sitofp %8 : vector<16x128xi32> to vector<16x128xf32>
    %10 = tpu.iota {dimensions = array<i32: 2>} : vector<2x8x128xi32>
    %11 = tpu.iota {dimensions = array<i32: 1>} : vector<8x8xi32>
    %c5_i32 = arith.constant 5 : i32
    %12 = vector.broadcast %c5_i32 : i32 to vector<8x8xi32>
    %13 = arith.cmpi slt, %11, %12 : vector<8x8xi32>
    %cst = arith.constant 0.000000e+00 : f32
    %cst_3 = arith.constant -1.000000e+30 : f32
    %14 = vector.broadcast %cst : f32 to vector<8x8xf32>
    %15 = vector.broadcast %cst_3 : f32 to vector<8x8xf32>
    %16 = arith.select %13, %14, %15 : vector<8x8xi1>, vector<8x8xf32>
    %17 = vector.shape_cast %16 : vector<8x8xf32> to vector<1x8x8xf32>
    %c0_4 = arith.constant 0 : index
    %c0_5 = arith.constant 0 : index
    %c0_6 = arith.constant 0 : index
    %18 = vector.load %arg5[%c0_4, %c0_5, %c0_6] : memref<1x1x128xf32, #tpu.memory_space<vmem>>, vector<1x1x128xf32>
    %19 = vector.shape_cast %18 : vector<1x1x128xf32> to vector<1x128xf32>
    %c0_7 = arith.constant 0 : index
    %c0_8 = arith.constant 0 : index
    %c0_9 = arith.constant 0 : index
    %20 = vector.load %arg6[%c0_7, %c0_8, %c0_9] : memref<1x1x128xf32, #tpu.memory_space<vmem>>, vector<1x1x128xf32>
    %21 = vector.shape_cast %20 : vector<1x1x128xf32> to vector<1x128xf32>
    %cst_10 = arith.constant dense<0.000000e+00> : vector<16xf32>
    %22 = vector.multi_reduction <add>, %4, %cst_10 [1] : vector<16x128xf32> to vector<16xf32>
    %23 = vector.shape_cast %22 : vector<16xf32> to vector<16x1xf32>
    %cst_11 = arith.constant 3.125000e-02 : f32
    %24 = vector.broadcast %cst_11 : f32 to vector<16x1xf32>
    %25 = arith.mulf %23, %24 : vector<16x1xf32>
    %26 = vector.broadcast %25 : vector<16x1xf32> to vector<16x128xf32>
    %27 = arith.subf %4, %26 : vector<16x128xf32>
    %28 = arith.mulf %27, %9 : vector<16x128xf32>
    %29 = arith.mulf %28, %28 : vector<16x128xf32>
    %cst_12 = arith.constant dense<0.000000e+00> : vector<16xf32>
    %30 = vector.multi_reduction <add>, %29, %cst_12 [1] : vector<16x128xf32> to vector<16xf32>
    %31 = vector.shape_cast %30 : vector<16xf32> to vector<16x1xf32>
    %cst_13 = arith.constant 3.125000e-02 : f32
    %32 = vector.broadcast %cst_13 : f32 to vector<16x1xf32>
    %33 = arith.mulf %31, %32 : vector<16x1xf32>
    %cst_14 = arith.constant 9.99999996E-13 : f32
    %34 = vector.broadcast %cst_14 : f32 to vector<16x1xf32>
    %35 = arith.addf %33, %34 : vector<16x1xf32>
    %36 = math.rsqrt %35 : vector<16x1xf32>
    %37 = vector.broadcast %36 : vector<16x1xf32> to vector<16x128xf32>
    %38 = arith.mulf %28, %37 : vector<16x128xf32>
    %39 = vector.broadcast %19 : vector<1x128xf32> to vector<16x128xf32>
    %40 = arith.mulf %38, %39 : vector<16x128xf32>
    %41 = vector.broadcast %21 : vector<1x128xf32> to vector<16x128xf32>
    %42 = arith.addf %40, %41 : vector<16x128xf32>
    %43 = arith.truncf %42 : vector<16x128xf32> to vector<16x128xbf16>
    %c0_15 = arith.constant 0 : index
    %c0_16 = arith.constant 0 : index
    %c0_17 = arith.constant 0 : index
    %44 = vector.load %arg7[%c0_15, %c0_16, %c0_17] : memref<1x128x384xbf16, #tpu.memory_space<vmem>>, vector<1x128x384xbf16>
    %45 = vector.shape_cast %44 : vector<1x128x384xbf16> to vector<128x384xbf16>
    %cst_18 = arith.constant dense<0.000000e+00> : vector<16x384xf32>
    %46 = tpu.matmul %43, %45, %cst_18 {dimension_numbers = #tpu.dot_dimension_numbers<[1], [0], [0], [1], [0, 0, 1, 1], [], []>} : vector<16x128xbf16>, vector<128x384xbf16>, vector<16x384xf32> -> vector<16x384xf32>
    %c0_19 = arith.constant 0 : index
    %c0_20 = arith.constant 0 : index
    %c0_21 = arith.constant 0 : index
    %47 = vector.load %arg8[%c0_19, %c0_20, %c0_21] : memref<1x1x384xf32, #tpu.memory_space<vmem>>, vector<1x1x384xf32>
    %48 = vector.shape_cast %47 : vector<1x1x384xf32> to vector<1x384xf32>
    %49 = vector.broadcast %48 : vector<1x384xf32> to vector<16x384xf32>
    %50 = arith.addf %46, %49 : vector<16x384xf32>
    %51 = vector.extract_strided_slice %50 {offsets = [0, 0], sizes = [16, 128], strides = [1, 1]} : vector<16x384xf32> to vector<16x128xf32>
    %52 = vector.shape_cast %51 : vector<16x128xf32> to vector<2x8x128xf32>
    %53 = vector.extract_strided_slice %50 {offsets = [0, 128], sizes = [16, 128], strides = [1, 1]} : vector<16x384xf32> to vector<16x128xf32>
    %54 = vector.shape_cast %53 : vector<16x128xf32> to vector<2x8x128xf32>
    %55 = arith.truncf %54 : vector<2x8x128xf32> to vector<2x8x128xbf16>
    %56 = vector.extract_strided_slice %50 {offsets = [0, 256], sizes = [16, 128], strides = [1, 1]} : vector<16x384xf32> to vector<16x128xf32>
    %57 = vector.shape_cast %56 : vector<16x128xf32> to vector<2x8x128xf32>
    %58 = arith.truncf %57 : vector<2x8x128xf32> to vector<2x8x128xbf16>
    %cst_22 = arith.constant 0.000000e+00 : f32
    %59 = vector.broadcast %cst_22 : f32 to vector<2x8x128xf32>
    %c0_i32_23 = arith.constant 0 : i32
    %60 = vector.broadcast %c0_i32_23 : i32 to vector<2x8x128xi32>
    %61 = arith.cmpi sge, %10, %60 : vector<2x8x128xi32>
    %c16_i32 = arith.constant 16 : i32
    %62 = vector.broadcast %c16_i32 : i32 to vector<2x8x128xi32>
    %63 = arith.cmpi slt, %10, %62 : vector<2x8x128xi32>
    %64 = arith.andi %61, %63 : vector<2x8x128xi1>
    %65 = arith.extui %64 : vector<2x8x128xi1> to vector<2x8x128xi32>
    %66 = arith.sitofp %65 : vector<2x8x128xi32> to vector<2x8x128xf32>
    %67 = arith.mulf %52, %66 : vector<2x8x128xf32>
    %68 = arith.truncf %67 : vector<2x8x128xf32> to vector<2x8x128xbf16>
    "tpu.trace_start"() <{level = 10 : i32, message = "bqd,bkd->bqk"}> : () -> ()
    %cst_24 = arith.constant dense<0.000000e+00> : vector<2x8x8xf32>
    %69 = tpu.matmul %68, %55, %cst_24 {dimension_numbers = #tpu.dot_dimension_numbers<[2], [2], [1], [1], [0, 0, 0, 1, 1, 1], [0], [0]>} : vector<2x8x128xbf16>, vector<2x8x128xbf16>, vector<2x8x8xf32> -> vector<2x8x8xf32>
    "tpu.trace_stop"() : () -> ()
    %cst_25 = arith.constant 2.500000e-01 : f32
    %70 = vector.broadcast %cst_25 : f32 to vector<2x8x8xf32>
    %71 = arith.mulf %69, %70 : vector<2x8x8xf32>
    %72 = vector.broadcast %17 : vector<1x8x8xf32> to vector<2x8x8xf32>
    %73 = arith.addf %71, %72 : vector<2x8x8xf32>
    %cst_26 = arith.constant dense<0xFF800000> : vector<2x8xf32>
    %74 = vector.multi_reduction <maximumf>, %73, %cst_26 [2] : vector<2x8x8xf32> to vector<2x8xf32>
    %75 = vector.shape_cast %74 : vector<2x8xf32> to vector<2x8x1xf32>
    %76 = vector.broadcast %75 : vector<2x8x1xf32> to vector<2x8x8xf32>
    %77 = arith.subf %73, %76 : vector<2x8x8xf32>
    %78 = math.exp %77 : vector<2x8x8xf32>
    %cst_27 = arith.constant dense<0.000000e+00> : vector<2x8xf32>
    %79 = vector.multi_reduction <add>, %78, %cst_27 [2] : vector<2x8x8xf32> to vector<2x8xf32>
    %80 = vector.shape_cast %79 : vector<2x8xf32> to vector<2x8x1xf32>
    %81 = vector.broadcast %80 : vector<2x8x1xf32> to vector<2x8x8xf32>
    %82 = arith.divf %78, %81 : vector<2x8x8xf32>
    %83 = arith.truncf %82 : vector<2x8x8xf32> to vector<2x8x8xbf16>
    "tpu.trace_start"() <{level = 10 : i32, message = "bqk,bkd->bqd"}> : () -> ()
    %cst_28 = arith.constant dense<0.000000e+00> : vector<2x8x128xf32>
    %84 = tpu.matmul %83, %58, %cst_28 {dimension_numbers = #tpu.dot_dimension_numbers<[2], [1], [1], [2], [0, 0, 0, 1, 1, 2], [0], [0]>} : vector<2x8x8xbf16>, vector<2x8x128xbf16>, vector<2x8x128xf32> -> vector<2x8x128xf32>
    "tpu.trace_stop"() : () -> ()
    %85 = arith.mulf %84, %66 : vector<2x8x128xf32>
    %86 = arith.addf %59, %85 : vector<2x8x128xf32>
    %c16_i32_29 = arith.constant 16 : i32
    %87 = vector.broadcast %c16_i32_29 : i32 to vector<2x8x128xi32>
    %88 = arith.cmpi sge, %10, %87 : vector<2x8x128xi32>
    %c32_i32_30 = arith.constant 32 : i32
    %89 = vector.broadcast %c32_i32_30 : i32 to vector<2x8x128xi32>
    %90 = arith.cmpi slt, %10, %89 : vector<2x8x128xi32>
    %91 = arith.andi %88, %90 : vector<2x8x128xi1>
    %92 = arith.extui %91 : vector<2x8x128xi1> to vector<2x8x128xi32>
    %93 = arith.sitofp %92 : vector<2x8x128xi32> to vector<2x8x128xf32>
    %94 = arith.mulf %52, %93 : vector<2x8x128xf32>
    %95 = arith.truncf %94 : vector<2x8x128xf32> to vector<2x8x128xbf16>
    "tpu.trace_start"() <{level = 10 : i32, message = "bqd,bkd->bqk"}> : () -> ()
    %cst_31 = arith.constant dense<0.000000e+00> : vector<2x8x8xf32>
    %96 = tpu.matmul %95, %55, %cst_31 {dimension_numbers = #tpu.dot_dimension_numbers<[2], [2], [1], [1], [0, 0, 0, 1, 1, 1], [0], [0]>} : vector<2x8x128xbf16>, vector<2x8x128xbf16>, vector<2x8x8xf32> -> vector<2x8x8xf32>
    "tpu.trace_stop"() : () -> ()
    %cst_32 = arith.constant 2.500000e-01 : f32
    %97 = vector.broadcast %cst_32 : f32 to vector<2x8x8xf32>
    %98 = arith.mulf %96, %97 : vector<2x8x8xf32>
    %99 = vector.broadcast %17 : vector<1x8x8xf32> to vector<2x8x8xf32>
    %100 = arith.addf %98, %99 : vector<2x8x8xf32>
    %cst_33 = arith.constant dense<0xFF800000> : vector<2x8xf32>
    %101 = vector.multi_reduction <maximumf>, %100, %cst_33 [2] : vector<2x8x8xf32> to vector<2x8xf32>
    %102 = vector.shape_cast %101 : vector<2x8xf32> to vector<2x8x1xf32>
    %103 = vector.broadcast %102 : vector<2x8x1xf32> to vector<2x8x8xf32>
    %104 = arith.subf %100, %103 : vector<2x8x8xf32>
    %105 = math.exp %104 : vector<2x8x8xf32>
    %cst_34 = arith.constant dense<0.000000e+00> : vector<2x8xf32>
    %106 = vector.multi_reduction <add>, %105, %cst_34 [2] : vector<2x8x8xf32> to vector<2x8xf32>
    %107 = vector.shape_cast %106 : vector<2x8xf32> to vector<2x8x1xf32>
    %108 = vector.broadcast %107 : vector<2x8x1xf32> to vector<2x8x8xf32>
    %109 = arith.divf %105, %108 : vector<2x8x8xf32>
    %110 = arith.truncf %109 : vector<2x8x8xf32> to vector<2x8x8xbf16>
    "tpu.trace_start"() <{level = 10 : i32, message = "bqk,bkd->bqd"}> : () -> ()
    %cst_35 = arith.constant dense<0.000000e+00> : vector<2x8x128xf32>
    %111 = tpu.matmul %110, %58, %cst_35 {dimension_numbers = #tpu.dot_dimension_numbers<[2], [1], [1], [2], [0, 0, 0, 1, 1, 2], [0], [0]>} : vector<2x8x8xbf16>, vector<2x8x128xbf16>, vector<2x8x128xf32> -> vector<2x8x128xf32>
    "tpu.trace_stop"() : () -> ()
    %112 = arith.mulf %111, %93 : vector<2x8x128xf32>
    %113 = arith.addf %86, %112 : vector<2x8x128xf32>
    %114 = vector.shape_cast %113 : vector<2x8x128xf32> to vector<16x128xf32>
    %115 = arith.truncf %114 : vector<16x128xf32> to vector<16x128xbf16>
    %c0_36 = arith.constant 0 : index
    %c0_37 = arith.constant 0 : index
    %c0_38 = arith.constant 0 : index
    %116 = vector.load %arg9[%c0_36, %c0_37, %c0_38] : memref<1x128x128xbf16, #tpu.memory_space<vmem>>, vector<1x128x128xbf16>
    %117 = vector.shape_cast %116 : vector<1x128x128xbf16> to vector<128x128xbf16>
    %cst_39 = arith.constant dense<0.000000e+00> : vector<16x128xf32>
    %118 = tpu.matmul %115, %117, %cst_39 {dimension_numbers = #tpu.dot_dimension_numbers<[1], [0], [0], [1], [0, 0, 1, 1], [], []>} : vector<16x128xbf16>, vector<128x128xbf16>, vector<16x128xf32> -> vector<16x128xf32>
    %c0_40 = arith.constant 0 : index
    %c0_41 = arith.constant 0 : index
    %c0_42 = arith.constant 0 : index
    %119 = vector.load %arg10[%c0_40, %c0_41, %c0_42] : memref<1x1x128xf32, #tpu.memory_space<vmem>>, vector<1x1x128xf32>
    %120 = vector.shape_cast %119 : vector<1x1x128xf32> to vector<1x128xf32>
    %121 = vector.broadcast %120 : vector<1x128xf32> to vector<16x128xf32>
    %122 = arith.addf %118, %121 : vector<16x128xf32>
    %123 = arith.addf %4, %122 : vector<16x128xf32>
    %c0_43 = arith.constant 0 : index
    %c0_44 = arith.constant 0 : index
    %c0_45 = arith.constant 0 : index
    %124 = vector.load %arg11[%c0_43, %c0_44, %c0_45] : memref<1x1x128xf32, #tpu.memory_space<vmem>>, vector<1x1x128xf32>
    %125 = vector.shape_cast %124 : vector<1x1x128xf32> to vector<1x128xf32>
    %c0_46 = arith.constant 0 : index
    %c0_47 = arith.constant 0 : index
    %c0_48 = arith.constant 0 : index
    %126 = vector.load %arg12[%c0_46, %c0_47, %c0_48] : memref<1x1x128xf32, #tpu.memory_space<vmem>>, vector<1x1x128xf32>
    %127 = vector.shape_cast %126 : vector<1x1x128xf32> to vector<1x128xf32>
    %cst_49 = arith.constant dense<0.000000e+00> : vector<16xf32>
    %128 = vector.multi_reduction <add>, %123, %cst_49 [1] : vector<16x128xf32> to vector<16xf32>
    %129 = vector.shape_cast %128 : vector<16xf32> to vector<16x1xf32>
    %cst_50 = arith.constant 3.125000e-02 : f32
    %130 = vector.broadcast %cst_50 : f32 to vector<16x1xf32>
    %131 = arith.mulf %129, %130 : vector<16x1xf32>
    %132 = vector.broadcast %131 : vector<16x1xf32> to vector<16x128xf32>
    %133 = arith.subf %123, %132 : vector<16x128xf32>
    %134 = arith.mulf %133, %9 : vector<16x128xf32>
    %135 = arith.mulf %134, %134 : vector<16x128xf32>
    %cst_51 = arith.constant dense<0.000000e+00> : vector<16xf32>
    %136 = vector.multi_reduction <add>, %135, %cst_51 [1] : vector<16x128xf32> to vector<16xf32>
    %137 = vector.shape_cast %136 : vector<16xf32> to vector<16x1xf32>
    %cst_52 = arith.constant 3.125000e-02 : f32
    %138 = vector.broadcast %cst_52 : f32 to vector<16x1xf32>
    %139 = arith.mulf %137, %138 : vector<16x1xf32>
    %cst_53 = arith.constant 9.99999996E-13 : f32
    %140 = vector.broadcast %cst_53 : f32 to vector<16x1xf32>
    %141 = arith.addf %139, %140 : vector<16x1xf32>
    %142 = math.rsqrt %141 : vector<16x1xf32>
    %143 = vector.broadcast %142 : vector<16x1xf32> to vector<16x128xf32>
    %144 = arith.mulf %134, %143 : vector<16x128xf32>
    %145 = vector.broadcast %125 : vector<1x128xf32> to vector<16x128xf32>
    %146 = arith.mulf %144, %145 : vector<16x128xf32>
    %147 = vector.broadcast %127 : vector<1x128xf32> to vector<16x128xf32>
    %148 = arith.addf %146, %147 : vector<16x128xf32>
    %149 = arith.truncf %148 : vector<16x128xf32> to vector<16x128xbf16>
    %c0_54 = arith.constant 0 : index
    %c0_55 = arith.constant 0 : index
    %c0_56 = arith.constant 0 : index
    %150 = vector.load %arg13[%c0_54, %c0_55, %c0_56] : memref<1x128x128xbf16, #tpu.memory_space<vmem>>, vector<1x128x128xbf16>
    %151 = vector.shape_cast %150 : vector<1x128x128xbf16> to vector<128x128xbf16>
    %cst_57 = arith.constant dense<0.000000e+00> : vector<16x128xf32>
    %152 = tpu.matmul %149, %151, %cst_57 {dimension_numbers = #tpu.dot_dimension_numbers<[1], [0], [0], [1], [0, 0, 1, 1], [], []>} : vector<16x128xbf16>, vector<128x128xbf16>, vector<16x128xf32> -> vector<16x128xf32>
    %c0_58 = arith.constant 0 : index
    %c0_59 = arith.constant 0 : index
    %c0_60 = arith.constant 0 : index
    %153 = vector.load %arg14[%c0_58, %c0_59, %c0_60] : memref<1x1x128xf32, #tpu.memory_space<vmem>>, vector<1x1x128xf32>
    %154 = vector.shape_cast %153 : vector<1x1x128xf32> to vector<1x128xf32>
    %155 = vector.broadcast %154 : vector<1x128xf32> to vector<16x128xf32>
    %156 = arith.addf %152, %155 : vector<16x128xf32>
    %cst_61 = arith.constant 0.707106769 : f32
    %157 = vector.broadcast %cst_61 : f32 to vector<16x128xf32>
    %158 = arith.mulf %156, %157 : vector<16x128xf32>
    %159 = math.absf %158 : vector<16x128xf32>
    %cst_62 = arith.constant 0.327591091 : f32
    %160 = vector.broadcast %cst_62 : f32 to vector<16x128xf32>
    %161 = arith.mulf %160, %159 : vector<16x128xf32>
    %cst_63 = arith.constant 1.000000e+00 : f32
    %162 = vector.broadcast %cst_63 : f32 to vector<16x128xf32>
    %163 = arith.addf %162, %161 : vector<16x128xf32>
    %164 = tpu.reciprocal %163 {approx = true} : vector<16x128xf32> -> vector<16x128xf32>
    %165 = arith.mulf %163, %164 : vector<16x128xf32>
    %cst_64 = arith.constant 2.000000e+00 : f32
    %166 = vector.broadcast %cst_64 : f32 to vector<16x128xf32>
    %167 = arith.subf %166, %165 : vector<16x128xf32>
    %168 = arith.mulf %164, %167 : vector<16x128xf32>
    %cst_65 = arith.constant 1.06140542 : f32
    %169 = vector.broadcast %cst_65 : f32 to vector<16x128xf32>
    %170 = arith.mulf %169, %168 : vector<16x128xf32>
    %cst_66 = arith.constant -1.45315206 : f32
    %171 = vector.broadcast %cst_66 : f32 to vector<16x128xf32>
    %172 = arith.addf %170, %171 : vector<16x128xf32>
    %173 = arith.mulf %172, %168 : vector<16x128xf32>
    %cst_67 = arith.constant 1.42141378 : f32
    %174 = vector.broadcast %cst_67 : f32 to vector<16x128xf32>
    %175 = arith.addf %173, %174 : vector<16x128xf32>
    %176 = arith.mulf %175, %168 : vector<16x128xf32>
    %cst_68 = arith.constant -0.284496725 : f32
    %177 = vector.broadcast %cst_68 : f32 to vector<16x128xf32>
    %178 = arith.addf %176, %177 : vector<16x128xf32>
    %179 = arith.mulf %178, %168 : vector<16x128xf32>
    %cst_69 = arith.constant 0.254829586 : f32
    %180 = vector.broadcast %cst_69 : f32 to vector<16x128xf32>
    %181 = arith.addf %179, %180 : vector<16x128xf32>
    %182 = arith.mulf %181, %168 : vector<16x128xf32>
    %cst_70 = arith.constant 0.000000e+00 : f32
    %183 = vector.broadcast %cst_70 : f32 to vector<16x128xf32>
    %184 = arith.subf %183, %159 : vector<16x128xf32>
    %185 = arith.mulf %184, %159 : vector<16x128xf32>
    %186 = math.exp %185 : vector<16x128xf32>
    %187 = arith.mulf %182, %186 : vector<16x128xf32>
    %cst_71 = arith.constant 1.000000e+00 : f32
    %188 = vector.broadcast %cst_71 : f32 to vector<16x128xf32>
    %189 = arith.subf %188, %187 : vector<16x128xf32>
    %cst_72 = arith.constant 0.000000e+00 : f32
    %190 = vector.broadcast %cst_72 : f32 to vector<16x128xf32>
    %191 = arith.cmpf olt, %158, %190 : vector<16x128xf32>
    %cst_73 = arith.constant 0.000000e+00 : f32
    %192 = vector.broadcast %cst_73 : f32 to vector<16x128xf32>
    %193 = arith.subf %192, %189 : vector<16x128xf32>
    %194 = arith.select %191, %193, %189 : vector<16x128xi1>, vector<16x128xf32>
    %cst_74 = arith.constant 5.000000e-01 : f32
    %195 = vector.broadcast %cst_74 : f32 to vector<16x128xf32>
    %196 = arith.mulf %195, %156 : vector<16x128xf32>
    %cst_75 = arith.constant 1.000000e+00 : f32
    %197 = vector.broadcast %cst_75 : f32 to vector<16x128xf32>
    %198 = arith.addf %197, %194 : vector<16x128xf32>
    %199 = arith.mulf %196, %198 : vector<16x128xf32>
    %200 = arith.truncf %199 : vector<16x128xf32> to vector<16x128xbf16>
    %c0_76 = arith.constant 0 : index
    %c0_77 = arith.constant 0 : index
    %c0_78 = arith.constant 0 : index
    %201 = vector.load %arg15[%c0_76, %c0_77, %c0_78] : memref<1x128x128xbf16, #tpu.memory_space<vmem>>, vector<1x128x128xbf16>
    %202 = vector.shape_cast %201 : vector<1x128x128xbf16> to vector<128x128xbf16>
    %cst_79 = arith.constant dense<0.000000e+00> : vector<16x128xf32>
    %203 = tpu.matmul %200, %202, %cst_79 {dimension_numbers = #tpu.dot_dimension_numbers<[1], [0], [0], [1], [0, 0, 1, 1], [], []>} : vector<16x128xbf16>, vector<128x128xbf16>, vector<16x128xf32> -> vector<16x128xf32>
    %204 = arith.addf %123, %203 : vector<16x128xf32>
    %c0_80 = arith.constant 0 : index
    %c0_81 = arith.constant 0 : index
    %c0_82 = arith.constant 0 : index
    %205 = vector.load %arg16[%c0_80, %c0_81, %c0_82] : memref<1x1x128xf32, #tpu.memory_space<vmem>>, vector<1x1x128xf32>
    %206 = vector.shape_cast %205 : vector<1x1x128xf32> to vector<1x128xf32>
    %207 = vector.broadcast %206 : vector<1x128xf32> to vector<16x128xf32>
    %208 = arith.addf %204, %207 : vector<16x128xf32>
    %209 = vector.shape_cast %208 : vector<16x128xf32> to vector<2x8x128xf32>
    %c0_83 = arith.constant 0 : index
    %c0_84 = arith.constant 0 : index
    %c0_85 = arith.constant 0 : index
    %210 = vector.load %arg20[%c0_83, %c0_84, %c0_85] : memref<2x8x128xf32, #tpu.memory_space<vmem>>, vector<2x8x128xf32>
    tpu.vector_store %arg20[%c0_83, %c0_84, %c0_85], %209 {strides = array<i32>} : memref<2x8x128xf32, #tpu.memory_space<vmem>>, vector<2x8x128xf32>,
    %c1_i32 = arith.constant 1 : i32
    %211 = arith.cmpi eq, %arg1, %c1_i32 : i32
    %212 = arith.extui %211 : i1 to i32
    %c0_i32_86 = arith.constant 0 : i32
    %213 = arith.cmpi ne, %212, %c0_i32_86 : i32
    scf.if %213 {
      %c0_87 = arith.constant 0 : index
      %c0_88 = arith.constant 0 : index
      %214 = vector.load %arg17[%c0_87, %c0_88] : memref<1x128xf32, #tpu.memory_space<vmem>>, vector<1x128xf32>
      %c0_89 = arith.constant 0 : index
      %c0_90 = arith.constant 0 : index
      %215 = vector.load %arg18[%c0_89, %c0_90] : memref<1x128xf32, #tpu.memory_space<vmem>>, vector<1x128xf32>
      %cst_91 = arith.constant dense<0.000000e+00> : vector<16xf32>
      %216 = vector.multi_reduction <add>, %208, %cst_91 [1] : vector<16x128xf32> to vector<16xf32>
      %217 = vector.shape_cast %216 : vector<16xf32> to vector<16x1xf32>
      %cst_92 = arith.constant 3.125000e-02 : f32
      %218 = vector.broadcast %cst_92 : f32 to vector<16x1xf32>
      %219 = arith.mulf %217, %218 : vector<16x1xf32>
      %220 = vector.broadcast %219 : vector<16x1xf32> to vector<16x128xf32>
      %221 = arith.subf %208, %220 : vector<16x128xf32>
      %222 = arith.mulf %221, %9 : vector<16x128xf32>
      %223 = arith.mulf %222, %222 : vector<16x128xf32>
      %cst_93 = arith.constant dense<0.000000e+00> : vector<16xf32>
      %224 = vector.multi_reduction <add>, %223, %cst_93 [1] : vector<16x128xf32> to vector<16xf32>
      %225 = vector.shape_cast %224 : vector<16xf32> to vector<16x1xf32>
      %cst_94 = arith.constant 3.125000e-02 : f32
      %226 = vector.broadcast %cst_94 : f32 to vector<16x1xf32>
      %227 = arith.mulf %225, %226 : vector<16x1xf32>
      %cst_95 = arith.constant 9.99999996E-13 : f32
      %228 = vector.broadcast %cst_95 : f32 to vector<16x1xf32>
      %229 = arith.addf %227, %228 : vector<16x1xf32>
      %230 = math.rsqrt %229 : vector<16x1xf32>
      %231 = vector.broadcast %230 : vector<16x1xf32> to vector<16x128xf32>
      %232 = arith.mulf %222, %231 : vector<16x128xf32>
      %233 = vector.broadcast %214 : vector<1x128xf32> to vector<16x128xf32>
      %234 = arith.mulf %232, %233 : vector<16x128xf32>
      %235 = vector.broadcast %215 : vector<1x128xf32> to vector<16x128xf32>
      %236 = arith.addf %234, %235 : vector<16x128xf32>
      %237 = vector.shape_cast %236 : vector<16x128xf32> to vector<2x8x128xf32>
      %c0_96 = arith.constant 0 : index
      %c0_97 = arith.constant 0 : index
      %c0_98 = arith.constant 0 : index
      %238 = vector.load %arg19[%c0_96, %c0_97, %c0_98] : memref<2x8x128xf32, #tpu.memory_space<vmem>>, vector<2x8x128xf32>
      tpu.vector_store %arg19[%c0_96, %c0_97, %c0_98], %237 {strides = array<i32>} : memref<2x8x128xf32, #tpu.memory_space<vmem>>, vector<2x8x128xf32>,
    } else {
    }
    return
  }
  func.func @transform_0(%arg0: i32, %arg1: i32) -> (i32, i32, i32) {
    %c0_i32 = arith.constant 0 : i32
    %c0_i32_0 = arith.constant 0 : i32
    %c0_i32_1 = arith.constant 0 : i32
    return %arg0, %c0_i32, %c0_i32_0 : i32, i32, i32
  }
  func.func @transform_1(%arg0: i32, %arg1: i32) -> (i32, i32) {
    %c0_i32 = arith.constant 0 : i32
    %c0_i32_0 = arith.constant 0 : i32
    %c0_i32_1 = arith.constant 0 : i32
    return %c0_i32, %c0_i32_0 : i32, i32
  }
  func.func @transform_2(%arg0: i32, %arg1: i32) -> (i32, i32) {
    %c0_i32 = arith.constant 0 : i32
    %c0_i32_0 = arith.constant 0 : i32
    %c0_i32_1 = arith.constant 0 : i32
    return %c0_i32, %c0_i32_0 : i32, i32
  }
  func.func @transform_3(%arg0: i32, %arg1: i32) -> (i32, i32, i32) {
    %c0_i32 = arith.constant 0 : i32
    %c0_i32_0 = arith.constant 0 : i32
    %c0_i32_1 = arith.constant 0 : i32
    return %arg1, %c0_i32, %c0_i32_0 : i32, i32, i32
  }
  func.func @transform_4(%arg0: i32, %arg1: i32) -> (i32, i32, i32) {
    %c0_i32 = arith.constant 0 : i32
    %c0_i32_0 = arith.constant 0 : i32
    %c0_i32_1 = arith.constant 0 : i32
    return %arg1, %c0_i32, %c0_i32_0 : i32, i32, i32
  }
  func.func @transform_5(%arg0: i32, %arg1: i32) -> (i32, i32, i32) {
    %c0_i32 = arith.constant 0 : i32
    %c0_i32_0 = arith.constant 0 : i32
    %c0_i32_1 = arith.constant 0 : i32
    return %arg1, %c0_i32, %c0_i32_0 : i32, i32, i32
  }
  func.func @transform_6(%arg0: i32, %arg1: i32) -> (i32, i32, i32) {
    %c0_i32 = arith.constant 0 : i32
    %c0_i32_0 = arith.constant 0 : i32
    %c0_i32_1 = arith.constant 0 : i32
    return %arg1, %c0_i32, %c0_i32_0 : i32, i32, i32
  }
  func.func @transform_7(%arg0: i32, %arg1: i32) -> (i32, i32, i32) {
    %c0_i32 = arith.constant 0 : i32
    %c0_i32_0 = arith.constant 0 : i32
    %c0_i32_1 = arith.constant 0 : i32
    return %arg1, %c0_i32, %c0_i32_0 : i32, i32, i32
  }
  func.func @transform_8(%arg0: i32, %arg1: i32) -> (i32, i32, i32) {
    %c0_i32 = arith.constant 0 : i32
    %c0_i32_0 = arith.constant 0 : i32
    %c0_i32_1 = arith.constant 0 : i32
    return %arg1, %c0_i32, %c0_i32_0 : i32, i32, i32
  }
  func.func @transform_9(%arg0: i32, %arg1: i32) -> (i32, i32, i32) {
    %c0_i32 = arith.constant 0 : i32
    %c0_i32_0 = arith.constant 0 : i32
    %c0_i32_1 = arith.constant 0 : i32
    return %arg1, %c0_i32, %c0_i32_0 : i32, i32, i32
  }
  func.func @transform_10(%arg0: i32, %arg1: i32) -> (i32, i32, i32) {
    %c0_i32 = arith.constant 0 : i32
    %c0_i32_0 = arith.constant 0 : i32
    %c0_i32_1 = arith.constant 0 : i32
    return %arg1, %c0_i32, %c0_i32_0 : i32, i32, i32
  }
  func.func @transform_11(%arg0: i32, %arg1: i32) -> (i32, i32, i32) {
    %c0_i32 = arith.constant 0 : i32
    %c0_i32_0 = arith.constant 0 : i32
    %c0_i32_1 = arith.constant 0 : i32
    return %arg1, %c0_i32, %c0_i32_0 : i32, i32, i32
  }
  func.func @transform_12(%arg0: i32, %arg1: i32) -> (i32, i32, i32) {
    %c0_i32 = arith.constant 0 : i32
    %c0_i32_0 = arith.constant 0 : i32
    %c0_i32_1 = arith.constant 0 : i32
    return %arg1, %c0_i32, %c0_i32_0 : i32, i32, i32
  }
  func.func @transform_13(%arg0: i32, %arg1: i32) -> (i32, i32, i32) {
    %c0_i32 = arith.constant 0 : i32
    %c0_i32_0 = arith.constant 0 : i32
    %c0_i32_1 = arith.constant 0 : i32
    return %arg1, %c0_i32, %c0_i32_0 : i32, i32, i32
  }
  func.func @transform_14(%arg0: i32, %arg1: i32) -> (i32, i32, i32) {
    %c0_i32 = arith.constant 0 : i32
    %c0_i32_0 = arith.constant 0 : i32
    %c0_i32_1 = arith.constant 0 : i32
    return %arg1, %c0_i32, %c0_i32_0 : i32, i32, i32
  }
  func.func @transform_15(%arg0: i32, %arg1: i32) -> (i32, i32) {
    %c0_i32 = arith.constant 0 : i32
    %c0_i32_0 = arith.constant 0 : i32
    %c0_i32_1 = arith.constant 0 : i32
    return %c0_i32, %c0_i32_0 : i32, i32
  }
  func.func @transform_16(%arg0: i32, %arg1: i32) -> (i32, i32) {
    %c0_i32 = arith.constant 0 : i32
    %c0_i32_0 = arith.constant 0 : i32
    %c0_i32_1 = arith.constant 0 : i32
    return %c0_i32, %c0_i32_0 : i32, i32
  }
  func.func @transform_17(%arg0: i32, %arg1: i32) -> (i32, i32, i32) {
    %c0_i32 = arith.constant 0 : i32
    %c0_i32_0 = arith.constant 0 : i32
    %c0_i32_1 = arith.constant 0 : i32
    return %arg0, %c0_i32, %c0_i32_0 : i32, i32, i32
  }
}

</mosaic_0001>

<llo_original>
// kernel: dino_wrapper_forward.1
$region0: #{dino_wrapper_forward.1}
  #allocation0 [shape = 'u32[]', space=smem, size = 0x4, offset = 0x4, fixed_abs, tag = 'smem constant byte address 0x4 - core index']
  #allocation1 [shape = 'u32[144,128]{1,0:T(1,128)}', space=vmem, size = 0x12000, scoped, tag = 'internal scratch']
  #allocation2 [shape = 'f32[2,8,128]{2,1,0:T(8,128)}', space=vmem, size = 0x2000, scoped, tag = 'scratch operand']
  %s0 = inlined_call_operand.vmem [shape: bf16[4,8,256], index: 0, kind: input, shape index: {}]
  %s1 = inlined_call_operand.vmem [shape: f32[8,128], index: 1, kind: input, shape index: {}]
  %s2 = inlined_call_operand.vmem [shape: bf16[256,128], index: 2, kind: input, shape index: {}]
  %s3 = inlined_call_operand.vmem [shape: f32[2,1,128], index: 3, kind: input, shape index: {}]
  %s4 = inlined_call_operand.vmem [shape: f32[2,1,128], index: 4, kind: input, shape index: {}]
  %s5 = inlined_call_operand.vmem [shape: bf16[2,128,384], index: 5, kind: input, shape index: {}]
  %s6 = inlined_call_operand.vmem [shape: f32[2,1,384], index: 6, kind: input, shape index: {}]
  %s7 = inlined_call_operand.vmem [shape: bf16[2,128,128], index: 7, kind: input, shape index: {}]
  %s8 = inlined_call_operand.vmem [shape: f32[2,1,128], index: 8, kind: input, shape index: {}]
  %s9 = inlined_call_operand.vmem [shape: f32[2,1,128], index: 9, kind: input, shape index: {}]
  %s10 = inlined_call_operand.vmem [shape: f32[2,1,128], index: 10, kind: input, shape index: {}]
  %s11 = inlined_call_operand.vmem [shape: bf16[2,128,128], index: 11, kind: input, shape index: {}]
  %s12 = inlined_call_operand.vmem [shape: f32[2,1,128], index: 12, kind: input, shape index: {}]
  %s13 = inlined_call_operand.vmem [shape: bf16[2,128,128], index: 13, kind: input, shape index: {}]
  %s14 = inlined_call_operand.vmem [shape: f32[2,1,128], index: 14, kind: input, shape index: {}]
  %s15 = inlined_call_operand.vmem [shape: f32[1,128], index: 15, kind: input, shape index: {}]
  %s16 = inlined_call_operand.vmem [shape: f32[1,128], index: 16, kind: input, shape index: {}]
  %s17 = inlined_call_operand.vmem [shape: f32[4,8,128], index: 17, kind: output, shape index: {}]
  %s18 = sld [smem:[#allocation0]]
  $region109: #{dino_wrapper_forward.1} parent=0
    _
  %s20 = ssub.s32 1, %s18
  %s21 = scalar_select 0, %s20, %s18
  loop: start=0, step=1, limit=6
  $region2: #{dino_wrapper_forward.1} parent=0 // loop_pre_header
    _
  $region3: #{dino_wrapper_forward.1} parent=0 // loop_header
    %s23 = sphi 0, %s27
    %p24 = scmp.ge.s32.totalorder %s23, 6
    %s30 = sphi 0, %s42
    %s31 = sphi 0, %s38
    %s32 = sphi 0, %s30
    %s33 = sphi 0, %s31
    %s34 = sphi 0, %s32
    %s35 = sphi 0, %s33
    %s45 = sphi 0, %s47
    %s48 = sphi 0, %s45
    %s49 = sphi 0, %s48
    %s65 = sphi 0, %s49
    %s69 = sphi 0, %s69
    %s71 = sphi 0, %s69
    %s72 = sphi 0, %s71
    %s86 = sphi 0, %s72
    %s90 = sphi 0, %s90
    %s92 = sphi 0, %s90
    %s93 = sphi 0, %s92
    %s107 = sphi 0, %s93
    %s113 = sphi 0, %s115
    %s116 = sphi 0, %s113
    %s117 = sphi 0, %s116
    %s133 = sphi 0, %s117
    %s139 = sphi 0, %s141
    %s142 = sphi 0, %s139
    %s143 = sphi 0, %s142
    %s159 = sphi 0, %s143
    %s165 = sphi 0, %s167
    %s168 = sphi 0, %s165
    %s169 = sphi 0, %s168
    %s185 = sphi 0, %s169
    %s191 = sphi 0, %s193
    %s194 = sphi 0, %s191
    %s195 = sphi 0, %s194
    %s211 = sphi 0, %s195
    %s217 = sphi 0, %s219
    %s220 = sphi 0, %s217
    %s221 = sphi 0, %s220
    %s237 = sphi 0, %s221
    %s243 = sphi 0, %s245
    %s246 = sphi 0, %s243
    %s247 = sphi 0, %s246
    %s263 = sphi 0, %s247
    %s269 = sphi 0, %s271
    %s272 = sphi 0, %s269
    %s273 = sphi 0, %s272
    %s289 = sphi 0, %s273
    %s295 = sphi 0, %s297
    %s298 = sphi 0, %s295
    %s299 = sphi 0, %s298
    %s315 = sphi 0, %s299
    %s321 = sphi 0, %s323
    %s324 = sphi 0, %s321
    %s325 = sphi 0, %s324
    %s341 = sphi 0, %s325
    %s347 = sphi 0, %s349
    %s350 = sphi 0, %s347
    %s351 = sphi 0, %s350
    %s367 = sphi 0, %s351
    %s373 = sphi 0, %s375
    %s376 = sphi 0, %s373
    %s377 = sphi 0, %s376
    %s393 = sphi 0, %s377
    %s399 = sphi 0, %s401
    %s402 = sphi 0, %s399
    %s403 = sphi 0, %s402
    %s419 = sphi 0, %s403
    %s423 = sphi 0, %s423
    %s425 = sphi 0, %s423
    %s426 = sphi 0, %s425
    %s440 = sphi 0, %s426
    %s444 = sphi 0, %s444
    %s446 = sphi 0, %s444
    %s447 = sphi 0, %s446
    %s461 = sphi 0, %s447
    %s467 = sphi 0, %s469
    %s470 = sphi 0, %s467
    %s471 = sphi 0, %s470
    %s487 = sphi 0, %s471
  $region4: #{dino_wrapper_forward.1} parent=0 // loop_header_branch
    %26 = sbr.rel (%p24) target = $region8
  $region5: #{dino_wrapper_forward.1} parent=0 // loop_body
    %s28 = ssub.s32 %s23, 1
    %s29 = ssub.s32 %s23, 2
    %s36 = sadd.s32 1, %s31
    %p37 = scmp.ge.s32.totalorder %s36, 2
    %s38 = scalar_select %p37, 0, %s36
    %s39 = sadd.s32 1, %s30
    %s40 = scalar_select %p37, %s39, %s30
    %p41 = scmp.ge.s32.totalorder %s40, 2
    %s42 = scalar_select %p41, 0, %s40
    %s43 = ssub.s32 %s30, %s42
    %p44 = scmp.eq.s32.totalorder %s43, 0
    %s46 = sadd.s32 %s45, 1
    %s47 = scalar_select %p44, %s45, %s46
    %p50 = pneg %p44
    %p51 = scmp.eq.s32.totalorder %s23, 3
    %p52 = por %p50, %p51
    %p53 = scmp.ne.s32.totalorder %s45, %s48
    %p54 = scmp.eq.s32.totalorder %s23, 0
    %p55 = por %p53, %p54
    %p56 = scmp.ne.s32.totalorder %s45, %s48
    %p57 = scmp.eq.s32.totalorder %s28, 3
    %p58 = por %p56, %p57
    %p59 = scmp.ne.s32.totalorder %s48, %s49
    %p60 = scmp.eq.s32.totalorder %s28, 0
    %p61 = por %p59, %p60
    %p62 = scmp.ne.s32.totalorder %s48, %s49
    %p63 = scmp.eq.s32.totalorder %s29, 3
    %p64 = por %p62, %p63
    %p66 = scmp.ne.s32.totalorder %s49, %s65
    %p67 = scmp.eq.s32.totalorder %s29, 0
    %p68 = por %p66, %p67
    %s70 = sadd.s32 %s69, 1
    %p73 = scmp.eq.s32.totalorder %s23, 3
    %p74 = scmp.ne.s32.totalorder %s69, %s71
    %p75 = scmp.eq.s32.totalorder %s23, 0
    %p76 = por %p74, %p75
    %p77 = scmp.ne.s32.totalorder %s69, %s71
    %p78 = scmp.eq.s32.totalorder %s28, 3
    %p79 = por %p77, %p78
    %p80 = scmp.ne.s32.totalorder %s71, %s72
    %p81 = scmp.eq.s32.totalorder %s28, 0
    %p82 = por %p80, %p81
    %p83 = scmp.ne.s32.totalorder %s71, %s72
    %p84 = scmp.eq.s32.totalorder %s29, 3
    %p85 = por %p83, %p84
    %p87 = scmp.ne.s32.totalorder %s72, %s86
    %p88 = scmp.eq.s32.totalorder %s29, 0
    %p89 = por %p87, %p88
    %s91 = sadd.s32 %s90, 1
    %p94 = scmp.eq.s32.totalorder %s23, 3
    %p95 = scmp.ne.s32.totalorder %s90, %s92
    %p96 = scmp.eq.s32.totalorder %s23, 0
    %p97 = por %p95, %p96
    %p98 = scmp.ne.s32.totalorder %s90, %s92
    %p99 = scmp.eq.s32.totalorder %s28, 3
    %p100 = por %p98, %p99
    %p101 = scmp.ne.s32.totalorder %s92, %s93
    %p102 = scmp.eq.s32.totalorder %s28, 0
    %p103 = por %p101, %p102
    %p104 = scmp.ne.s32.totalorder %s92, %s93
    %p105 = scmp.eq.s32.totalorder %s29, 3
    %p106 = por %p104, %p105
    %p108 = scmp.ne.s32.totalorder %s93, %s107
    %p109 = scmp.eq.s32.totalorder %s29, 0
    %p110 = por %p108, %p109
    %s111 = ssub.s32 %s31, %s38
    %p112 = scmp.eq.s32.totalorder %s111, 0
    %s114 = sadd.s32 %s113, 1
    %s115 = scalar_select %p112, %s113, %s114
    %p118 = pneg %p112
    %p119 = scmp.eq.s32.totalorder %s23, 3
    %p120 = por %p118, %p119
    %p121 = scmp.ne.s32.totalorder %s113, %s116
    %p122 = scmp.eq.s32.totalorder %s23, 0
    %p123 = por %p121, %p122
    %p124 = scmp.ne.s32.totalorder %s113, %s116
    %p125 = scmp.eq.s32.totalorder %s28, 3
    %p126 = por %p124, %p125
    %p127 = scmp.ne.s32.totalorder %s116, %s117
    %p128 = scmp.eq.s32.totalorder %s28, 0
    %p129 = por %p127, %p128
    %p130 = scmp.ne.s32.totalorder %s116, %s117
    %p131 = scmp.eq.s32.totalorder %s29, 3
    %p132 = por %p130, %p131
    %p134 = scmp.ne.s32.totalorder %s117, %s133
    %p135 = scmp.eq.s32.totalorder %s29, 0
    %p136 = por %p134, %p135
    %s137 = ssub.s32 %s31, %s38
    %p138 = scmp.eq.s32.totalorder %s137, 0
    %s140 = sadd.s32 %s139, 1
    %s141 = scalar_select %p138, %s139, %s140
    %p144 = pneg %p138
    %p145 = scmp.eq.s32.totalorder %s23, 3
    %p146 = por %p144, %p145
    %p147 = scmp.ne.s32.totalorder %s139, %s142
    %p148 = scmp.eq.s32.totalorder %s23, 0
    %p149 = por %p147, %p148
    %p150 = scmp.ne.s32.totalorder %s139, %s142
    %p151 = scmp.eq.s32.totalorder %s28, 3
    %p152 = por %p150, %p151
    %p153 = scmp.ne.s32.totalorder %s142, %s143
    %p154 = scmp.eq.s32.totalorder %s28, 0
    %p155 = por %p153, %p154
    %p156 = scmp.ne.s32.totalorder %s142, %s143
    %p157 = scmp.eq.s32.totalorder %s29, 3
    %p158 = por %p156, %p157
    %p160 = scmp.ne.s32.totalorder %s143, %s159
    %p161 = scmp.eq.s32.totalorder %s29, 0
    %p162 = por %p160, %p161
    %s163 = ssub.s32 %s31, %s38
    %p164 = scmp.eq.s32.totalorder %s163, 0
    %s166 = sadd.s32 %s165, 1
    %s167 = scalar_select %p164, %s165, %s166
    %p170 = pneg %p164
    %p171 = scmp.eq.s32.totalorder %s23, 3
    %p172 = por %p170, %p171
    %p173 = scmp.ne.s32.totalorder %s165, %s168
    %p174 = scmp.eq.s32.totalorder %s23, 0
    %p175 = por %p173, %p174
    %p176 = scmp.ne.s32.totalorder %s165, %s168
    %p177 = scmp.eq.s32.totalorder %s28, 3
    %p178 = por %p176, %p177
    %p179 = scmp.ne.s32.totalorder %s168, %s169
    %p180 = scmp.eq.s32.totalorder %s28, 0
    %p181 = por %p179, %p180
    %p182 = scmp.ne.s32.totalorder %s168, %s169
    %p183 = scmp.eq.s32.totalorder %s29, 3
    %p184 = por %p182, %p183
    %p186 = scmp.ne.s32.totalorder %s169, %s185
    %p187 = scmp.eq.s32.totalorder %s29, 0
    %p188 = por %p186, %p187
    %s189 = ssub.s32 %s31, %s38
    %p190 = scmp.eq.s32.totalorder %s189, 0
    %s192 = sadd.s32 %s191, 1
    %s193 = scalar_select %p190, %s191, %s192
    %p196 = pneg %p190
    %p197 = scmp.eq.s32.totalorder %s23, 3
    %p198 = por %p196, %p197
    %p199 = scmp.ne.s32.totalorder %s191, %s194
    %p200 = scmp.eq.s32.totalorder %s23, 0
    %p201 = por %p199, %p200
    %p202 = scmp.ne.s32.totalorder %s191, %s194
    %p203 = scmp.eq.s32.totalorder %s28, 3
    %p204 = por %p202, %p203
    %p205 = scmp.ne.s32.totalorder %s194, %s195
    %p206 = scmp.eq.s32.totalorder %s28, 0
    %p207 = por %p205, %p206
    %p208 = scmp.ne.s32.totalorder %s194, %s195
    %p209 = scmp.eq.s32.totalorder %s29, 3
    %p210 = por %p208, %p209
    %p212 = scmp.ne.s32.totalorder %s195, %s211
    %p213 = scmp.eq.s32.totalorder %s29, 0
    %p214 = por %p212, %p213
    %s215 = ssub.s32 %s31, %s38
    %p216 = scmp.eq.s32.totalorder %s215, 0
    %s218 = sadd.s32 %s217, 1
    %s219 = scalar_select %p216, %s217, %s218
    %p222 = pneg %p216
    %p223 = scmp.eq.s32.totalorder %s23, 3
    %p224 = por %p222, %p223
    %p225 = scmp.ne.s32.totalorder %s217, %s220
    %p226 = scmp.eq.s32.totalorder %s23, 0
    %p227 = por %p225, %p226
    %p228 = scmp.ne.s32.totalorder %s217, %s220
    %p229 = scmp.eq.s32.totalorder %s28, 3
    %p230 = por %p228, %p229
    %p231 = scmp.ne.s32.totalorder %s220, %s221
    %p232 = scmp.eq.s32.totalorder %s28, 0
    %p233 = por %p231, %p232
    %p234 = scmp.ne.s32.totalorder %s220, %s221
    %p235 = scmp.eq.s32.totalorder %s29, 3
    %p236 = por %p234, %p235
    %p238 = scmp.ne.s32.totalorder %s221, %s237
    %p239 = scmp.eq.s32.totalorder %s29, 0
    %p240 = por %p238, %p239
    %s241 = ssub.s32 %s31, %s38
    %p242 = scmp.eq.s32.totalorder %s241, 0
    %s244 = sadd.s32 %s243, 1
    %s245 = scalar_select %p242, %s243, %s244
    %p248 = pneg %p242
    %p249 = scmp.eq.s32.totalorder %s23, 3
    %p250 = por %p248, %p249
    %p251 = scmp.ne.s32.totalorder %s243, %s246
    %p252 = scmp.eq.s32.totalorder %s23, 0
    %p253 = por %p251, %p252
    %p254 = scmp.ne.s32.totalorder %s243, %s246
    %p255 = scmp.eq.s32.totalorder %s28, 3
    %p256 = por %p254, %p255
    %p257 = scmp.ne.s32.totalorder %s246, %s247
    %p258 = scmp.eq.s32.totalorder %s28, 0
    %p259 = por %p257, %p258
    %p260 = scmp.ne.s32.totalorder %s246, %s247
    %p261 = scmp.eq.s32.totalorder %s29, 3
    %p262 = por %p260, %p261
    %p264 = scmp.ne.s32.totalorder %s247, %s263
    %p265 = scmp.eq.s32.totalorder %s29, 0
    %p266 = por %p264, %p265
    %s267 = ssub.s32 %s31, %s38
    %p268 = scmp.eq.s32.totalorder %s267, 0
    %s270 = sadd.s32 %s269, 1
    %s271 = scalar_select %p268, %s269, %s270
    %p274 = pneg %p268
    %p275 = scmp.eq.s32.totalorder %s23, 3
    %p276 = por %p274, %p275
    %p277 = scmp.ne.s32.totalorder %s269, %s272
    %p278 = scmp.eq.s32.totalorder %s23, 0
    %p279 = por %p277, %p278
    %p280 = scmp.ne.s32.totalorder %s269, %s272
    %p281 = scmp.eq.s32.totalorder %s28, 3
    %p282 = por %p280, %p281
    %p283 = scmp.ne.s32.totalorder %s272, %s273
    %p284 = scmp.eq.s32.totalorder %s28, 0
    %p285 = por %p283, %p284
    %p286 = scmp.ne.s32.totalorder %s272, %s273
    %p287 = scmp.eq.s32.totalorder %s29, 3
    %p288 = por %p286, %p287
    %p290 = scmp.ne.s32.totalorder %s273, %s289
    %p291 = scmp.eq.s32.totalorder %s29, 0
    %p292 = por %p290, %p291
    %s293 = ssub.s32 %s31, %s38
    %p294 = scmp.eq.s32.totalorder %s293, 0
    %s296 = sadd.s32 %s295, 1
    %s297 = scalar_select %p294, %s295, %s296
    %p300 = pneg %p294
    %p301 = scmp.eq.s32.totalorder %s23, 3
    %p302 = por %p300, %p301
    %p303 = scmp.ne.s32.totalorder %s295, %s298
    %p304 = scmp.eq.s32.totalorder %s23, 0
    %p305 = por %p303, %p304
    %p306 = scmp.ne.s32.totalorder %s295, %s298
    %p307 = scmp.eq.s32.totalorder %s28, 3
    %p308 = por %p306, %p307
    %p309 = scmp.ne.s32.totalorder %s298, %s299
    %p310 = scmp.eq.s32.totalorder %s28, 0
    %p311 = por %p309, %p310
    %p312 = scmp.ne.s32.totalorder %s298, %s299
    %p313 = scmp.eq.s32.totalorder %s29, 3
    %p314 = por %p312, %p313
    %p316 = scmp.ne.s32.totalorder %s299, %s315
    %p317 = scmp.eq.s32.totalorder %s29, 0
    %p318 = por %p316, %p317
    %s319 = ssub.s32 %s31, %s38
    %p320 = scmp.eq.s32.totalorder %s319, 0
    %s322 = sadd.s32 %s321, 1
    %s323 = scalar_select %p320, %s321, %s322
    %p326 = pneg %p320
    %p327 = scmp.eq.s32.totalorder %s23, 3
    %p328 = por %p326, %p327
    %p329 = scmp.ne.s32.totalorder %s321, %s324
    %p330 = scmp.eq.s32.totalorder %s23, 0
    %p331 = por %p329, %p330
    %p332 = scmp.ne.s32.totalorder %s321, %s324
    %p333 = scmp.eq.s32.totalorder %s28, 3
    %p334 = por %p332, %p333
    %p335 = scmp.ne.s32.totalorder %s324, %s325
    %p336 = scmp.eq.s32.totalorder %s28, 0
    %p337 = por %p335, %p336
    %p338 = scmp.ne.s32.totalorder %s324, %s325
    %p339 = scmp.eq.s32.totalorder %s29, 3
    %p340 = por %p338, %p339
    %p342 = scmp.ne.s32.totalorder %s325, %s341
    %p343 = scmp.eq.s32.totalorder %s29, 0
    %p344 = por %p342, %p343
    %s345 = ssub.s32 %s31, %s38
    %p346 = scmp.eq.s32.totalorder %s345, 0
    %s348 = sadd.s32 %s347, 1
    %s349 = scalar_select %p346, %s347, %s348
    %p352 = pneg %p346
    %p353 = scmp.eq.s32.totalorder %s23, 3
    %p354 = por %p352, %p353
    %p355 = scmp.ne.s32.totalorder %s347, %s350
    %p356 = scmp.eq.s32.totalorder %s23, 0
    %p357 = por %p355, %p356
    %p358 = scmp.ne.s32.totalorder %s347, %s350
    %p359 = scmp.eq.s32.totalorder %s28, 3
    %p360 = por %p358, %p359
    %p361 = scmp.ne.s32.totalorder %s350, %s351
    %p362 = scmp.eq.s32.totalorder %s28, 0
    %p363 = por %p361, %p362
    %p364 = scmp.ne.s32.totalorder %s350, %s351
    %p365 = scmp.eq.s32.totalorder %s29, 3
    %p366 = por %p364, %p365
    %p368 = scmp.ne.s32.totalorder %s351, %s367
    %p369 = scmp.eq.s32.totalorder %s29, 0
    %p370 = por %p368, %p369
    %s371 = ssub.s32 %s31, %s38
    %p372 = scmp.eq.s32.totalorder %s371, 0
    %s374 = sadd.s32 %s373, 1
    %s375 = scalar_select %p372, %s373, %s374
    %p378 = pneg %p372
    %p379 = scmp.eq.s32.totalorder %s23, 3
    %p380 = por %p378, %p379
    %p381 = scmp.ne.s32.totalorder %s373, %s376
    %p382 = scmp.eq.s32.totalorder %s23, 0
    %p383 = por %p381, %p382
    %p384 = scmp.ne.s32.totalorder %s373, %s376
    %p385 = scmp.eq.s32.totalorder %s28, 3
    %p386 = por %p384, %p385
    %p387 = scmp.ne.s32.totalorder %s376, %s377
    %p388 = scmp.eq.s32.totalorder %s28, 0
    %p389 = por %p387, %p388
    %p390 = scmp.ne.s32.totalorder %s376, %s377
    %p391 = scmp.eq.s32.totalorder %s29, 3
    %p392 = por %p390, %p391
    %p394 = scmp.ne.s32.totalorder %s377, %s393
    %p395 = scmp.eq.s32.totalorder %s29, 0
    %p396 = por %p394, %p395
    %s397 = ssub.s32 %s31, %s38
    %p398 = scmp.eq.s32.totalorder %s397, 0
    %s400 = sadd.s32 %s399, 1
    %s401 = scalar_select %p398, %s399, %s400
    %p404 = pneg %p398
    %p405 = scmp.eq.s32.totalorder %s23, 3
    %p406 = por %p404, %p405
    %p407 = scmp.ne.s32.totalorder %s399, %s402
    %p408 = scmp.eq.s32.totalorder %s23, 0
    %p409 = por %p407, %p408
    %p410 = scmp.ne.s32.totalorder %s399, %s402
    %p411 = scmp.eq.s32.totalorder %s28, 3
    %p412 = por %p410, %p411
    %p413 = scmp.ne.s32.totalorder %s402, %s403
    %p414 = scmp.eq.s32.totalorder %s28, 0
    %p415 = por %p413, %p414
    %p416 = scmp.ne.s32.totalorder %s402, %s403
    %p417 = scmp.eq.s32.totalorder %s29, 3
    %p418 = por %p416, %p417
    %p420 = scmp.ne.s32.totalorder %s403, %s419
    %p421 = scmp.eq.s32.totalorder %s29, 0
    %p422 = por %p420, %p421
    %s424 = sadd.s32 %s423, 1
    %p427 = scmp.eq.s32.totalorder %s23, 3
    %p428 = scmp.ne.s32.totalorder %s423, %s425
    %p429 = scmp.eq.s32.totalorder %s23, 0
    %p430 = por %p428, %p429
    %p431 = scmp.ne.s32.totalorder %s423, %s425
    %p432 = scmp.eq.s32.totalorder %s28, 3
    %p433 = por %p431, %p432
    %p434 = scmp.ne.s32.totalorder %s425, %s426
    %p435 = scmp.eq.s32.totalorder %s28, 0
    %p436 = por %p434, %p435
    %p437 = scmp.ne.s32.totalorder %s425, %s426
    %p438 = scmp.eq.s32.totalorder %s29, 3
    %p439 = por %p437, %p438
    %p441 = scmp.ne.s32.totalorder %s426, %s440
    %p442 = scmp.eq.s32.totalorder %s29, 0
    %p443 = por %p441, %p442
    %s445 = sadd.s32 %s444, 1
    %p448 = scmp.eq.s32.totalorder %s23, 3
    %p449 = scmp.ne.s32.totalorder %s444, %s446
    %p450 = scmp.eq.s32.totalorder %s23, 0
    %p451 = por %p449, %p450
    %p452 = scmp.ne.s32.totalorder %s444, %s446
    %p453 = scmp.eq.s32.totalorder %s28, 3
    %p454 = por %p452, %p453
    %p455 = scmp.ne.s32.totalorder %s446, %s447
    %p456 = scmp.eq.s32.totalorder %s28, 0
    %p457 = por %p455, %p456
    %p458 = scmp.ne.s32.totalorder %s446, %s447
    %p459 = scmp.eq.s32.totalorder %s29, 3
    %p460 = por %p458, %p459
    %p462 = scmp.ne.s32.totalorder %s447, %s461
    %p463 = scmp.eq.s32.totalorder %s29, 0
    %p464 = por %p462, %p463
    %s465 = ssub.s32 %s30, %s42
    %p466 = scmp.eq.s32.totalorder %s465, 0
    %s468 = sadd.s32 %s467, 1
    %s469 = scalar_select %p466, %s467, %s468
    %p472 = pneg %p466
    %p473 = scmp.eq.s32.totalorder %s23, 3
    %p474 = por %p472, %p473
    %p475 = scmp.ne.s32.totalorder %s467, %s470
    %p476 = scmp.eq.s32.totalorder %s23, 0
    %p477 = por %p475, %p476
    %p478 = scmp.ne.s32.totalorder %s467, %s470
    %p479 = scmp.eq.s32.totalorder %s28, 3
    %p480 = por %p478, %p479
    %p481 = scmp.ne.s32.totalorder %s470, %s471
    %p482 = scmp.eq.s32.totalorder %s28, 0
    %p483 = por %p481, %p482
    %p484 = scmp.ne.s32.totalorder %s470, %s471
    %p485 = scmp.eq.s32.totalorder %s29, 3
    %p486 = por %p484, %p485
    %p488 = scmp.ne.s32.totalorder %s471, %s487
    %p489 = scmp.eq.s32.totalorder %s29, 0
    %p490 = por %p488, %p489
    %p491 = scmp.le.s32.totalorder 1, %s23
    %p492 = scmp.lt.s32.totalorder %s23, 5
    %p493 = pnand %p491, %p492
    %p494 = pneg %p493
    // Predicated region
    $region9: #{dino_wrapper_forward.1} parent=5 // pred_check
      _
    $region10: #{dino_wrapper_forward.1} parent=5 // pred_check_branch
      %496 = sbr.rel (%p493) target = $region12
    $region11: #{dino_wrapper_forward.1} parent=5 // pred_region
      %s497 = ssub.s32 %s23, 1
      // Predicated region
      $region13: #{dino_wrapper_forward.1} parent=11 // pred_check
        %p498 = pneg %p82
      $region14: #{dino_wrapper_forward.1} parent=11 // pred_check_branch
        %500 = sbr.rel (%p498) target = $region16
      $region15: #{dino_wrapper_forward.1} parent=11 // pred_region
        _
      $region16: #{dino_wrapper_forward.1} parent=11 // pred_fallthru
        _
      // Predicated region
      $region17: #{dino_wrapper_forward.1} parent=11 // pred_check
        %p501 = pneg %p103
      $region18: #{dino_wrapper_forward.1} parent=11 // pred_check_branch
        %503 = sbr.rel (%p501) target = $region20
      $region19: #{dino_wrapper_forward.1} parent=11 // pred_region
        _
      $region20: #{dino_wrapper_forward.1} parent=11 // pred_fallthru
        _
      // Predicated region
      $region21: #{dino_wrapper_forward.1} parent=11 // pred_check
        %p504 = pneg %p436
      $region22: #{dino_wrapper_forward.1} parent=11 // pred_check_branch
        %506 = sbr.rel (%p504) target = $region24
      $region23: #{dino_wrapper_forward.1} parent=11 // pred_region
        _
      $region24: #{dino_wrapper_forward.1} parent=11 // pred_fallthru
        _
      // Predicated region
      $region25: #{dino_wrapper_forward.1} parent=11 // pred_check
        %p507 = pneg %p457
      $region26: #{dino_wrapper_forward.1} parent=11 // pred_check_branch
        %509 = sbr.rel (%p507) target = $region28
      $region27: #{dino_wrapper_forward.1} parent=11 // pred_region
        _
      $region28: #{dino_wrapper_forward.1} parent=11 // pred_fallthru
        _
    $region12: #{dino_wrapper_forward.1} parent=5 // pred_fallthru
      _
    %p510 = scmp.lt.s32.totalorder %s23, 4
    // Predicated region
    $region29: #{dino_wrapper_forward.1} parent=5 // pred_check
      %p511 = pneg %p510
    $region30: #{dino_wrapper_forward.1} parent=5 // pred_check_branch
      %513 = sbr.rel (%p511) target = $region32
    $region31: #{dino_wrapper_forward.1} parent=5 // pred_region
      // Predicated region
      $region33: #{dino_wrapper_forward.1} parent=31 // pred_check
        %p514 = pneg %p55
      $region34: #{dino_wrapper_forward.1} parent=31 // pred_check_branch
        %516 = sbr.rel (%p514) target = $region36
      $region35: #{dino_wrapper_forward.1} parent=31 // pred_region
        %s517 = smul.u32 2, %s30
        %p518 = scmp.lt.s32.totalorder %s517, 3
        %s519 = scalar_select %p518, %s517, 3
        %s520 = smul.addr %s519, 2
        %s521 = smul.addr %s520, 4
        %s522 = scalar_lea.vmem %s0, %s521
        %s523 = smul.u32 2, %s30
      $region36: #{dino_wrapper_forward.1} parent=31 // pred_fallthru
        _
      // Predicated region
      $region37: #{dino_wrapper_forward.1} parent=31 // pred_check
        %p524 = pneg %p123
      $region38: #{dino_wrapper_forward.1} parent=31 // pred_check_branch
        %526 = sbr.rel (%p524) target = $region40
      $region39: #{dino_wrapper_forward.1} parent=31 // pred_region
        %p527 = scmp.lt.s32.totalorder %s31, 1
        %s528 = scalar_select %p527, %s31, 1
        %s529 = scalar_lea.vmem %s3, %s528
      $region40: #{dino_wrapper_forward.1} parent=31 // pred_fallthru
        _
      // Predicated region
      $region41: #{dino_wrapper_forward.1} parent=31 // pred_check
        %p530 = pneg %p149
      $region42: #{dino_wrapper_forward.1} parent=31 // pred_check_branch
        %532 = sbr.rel (%p530) target = $region44
      $region43: #{dino_wrapper_forward.1} parent=31 // pred_region
        %p533 = scmp.lt.s32.totalorder %s31, 1
        %s534 = scalar_select %p533, %s31, 1
        %s535 = scalar_lea.vmem %s4, %s534
      $region44: #{dino_wrapper_forward.1} parent=31 // pred_fallthru
        _
      // Predicated region
      $region45: #{dino_wrapper_forward.1} parent=31 // pred_check
        %p536 = pneg %p175
      $region46: #{dino_wrapper_forward.1} parent=31 // pred_check_branch
        %538 = sbr.rel (%p536) target = $region48
      $region47: #{dino_wrapper_forward.1} parent=31 // pred_region
        %p539 = scmp.lt.s32.totalorder %s31, 1
        %s540 = scalar_select %p539, %s31, 1
        %s541 = smul.addr %s540, 48
        %s542 = smul.addr %s541, 4
        %s543 = scalar_lea.vmem %s5, %s542
      $region48: #{dino_wrapper_forward.1} parent=31 // pred_fallthru
        _
      // Predicated region
      $region49: #{dino_wrapper_forward.1} parent=31 // pred_check
        %p544 = pneg %p201
      $region50: #{dino_wrapper_forward.1} parent=31 // pred_check_branch
        %546 = sbr.rel (%p544) target = $region52
      $region51: #{dino_wrapper_forward.1} parent=31 // pred_region
        %p547 = scmp.lt.s32.totalorder %s31, 1
        %s548 = scalar_select %p547, %s31, 1
        %s549 = smul.addr %s548, 3
        %s550 = scalar_lea.vmem %s6, %s549
      $region52: #{dino_wrapper_forward.1} parent=31 // pred_fallthru
        _
      // Predicated region
      $region53: #{dino_wrapper_forward.1} parent=31 // pred_check
        %p551 = pneg %p227
      $region54: #{dino_wrapper_forward.1} parent=31 // pred_check_branch
        %553 = sbr.rel (%p551) target = $region56
      $region55: #{dino_wrapper_forward.1} parent=31 // pred_region
        %p554 = scmp.lt.s32.totalorder %s31, 1
        %s555 = scalar_select %p554, %s31, 1
        %s556 = smul.addr %s555, 16
        %s557 = smul.addr %s556, 4
        %s558 = scalar_lea.vmem %s7, %s557
      $region56: #{dino_wrapper_forward.1} parent=31 // pred_fallthru
        _
      // Predicated region
      $region57: #{dino_wrapper_forward.1} parent=31 // pred_check
        %p559 = pneg %p253
      $region58: #{dino_wrapper_forward.1} parent=31 // pred_check_branch
        %561 = sbr.rel (%p559) target = $region60
      $region59: #{dino_wrapper_forward.1} parent=31 // pred_region
        %p562 = scmp.lt.s32.totalorder %s31, 1
        %s563 = scalar_select %p562, %s31, 1
        %s564 = scalar_lea.vmem %s8, %s563
      $region60: #{dino_wrapper_forward.1} parent=31 // pred_fallthru
        _
      // Predicated region
      $region61: #{dino_wrapper_forward.1} parent=31 // pred_check
        %p565 = pneg %p279
      $region62: #{dino_wrapper_forward.1} parent=31 // pred_check_branch
        %567 = sbr.rel (%p565) target = $region64
      $region63: #{dino_wrapper_forward.1} parent=31 // pred_region
        %p568 = scmp.lt.s32.totalorder %s31, 1
        %s569 = scalar_select %p568, %s31, 1
        %s570 = scalar_lea.vmem %s9, %s569
      $region64: #{dino_wrapper_forward.1} parent=31 // pred_fallthru
        _
      // Predicated region
      $region65: #{dino_wrapper_forward.1} parent=31 // pred_check
        %p571 = pneg %p305
      $region66: #{dino_wrapper_forward.1} parent=31 // pred_check_branch
        %573 = sbr.rel (%p571) target = $region68
      $region67: #{dino_wrapper_forward.1} parent=31 // pred_region
        %p574 = scmp.lt.s32.totalorder %s31, 1
        %s575 = scalar_select %p574, %s31, 1
        %s576 = scalar_lea.vmem %s10, %s575
      $region68: #{dino_wrapper_forward.1} parent=31 // pred_fallthru
        _
      // Predicated region
      $region69: #{dino_wrapper_forward.1} parent=31 // pred_check
        %p577 = pneg %p331
      $region70: #{dino_wrapper_forward.1} parent=31 // pred_check_branch
        %579 = sbr.rel (%p577) target = $region72
      $region71: #{dino_wrapper_forward.1} parent=31 // pred_region
        %p580 = scmp.lt.s32.totalorder %s31, 1
        %s581 = scalar_select %p580, %s31, 1
        %s582 = smul.addr %s581, 16
        %s583 = smul.addr %s582, 4
        %s584 = scalar_lea.vmem %s11, %s583
      $region72: #{dino_wrapper_forward.1} parent=31 // pred_fallthru
        _
      // Predicated region
      $region73: #{dino_wrapper_forward.1} parent=31 // pred_check
        %p585 = pneg %p357
      $region74: #{dino_wrapper_forward.1} parent=31 // pred_check_branch
        %587 = sbr.rel (%p585) target = $region76
      $region75: #{dino_wrapper_forward.1} parent=31 // pred_region
        %p588 = scmp.lt.s32.totalorder %s31, 1
        %s589 = scalar_select %p588, %s31, 1
        %s590 = scalar_lea.vmem %s12, %s589
      $region76: #{dino_wrapper_forward.1} parent=31 // pred_fallthru
        _
      // Predicated region
      $region77: #{dino_wrapper_forward.1} parent=31 // pred_check
        %p591 = pneg %p383
      $region78: #{dino_wrapper_forward.1} parent=31 // pred_check_branch
        %593 = sbr.rel (%p591) target = $region80
      $region79: #{dino_wrapper_forward.1} parent=31 // pred_region
        %p594 = scmp.lt.s32.totalorder %s31, 1
        %s595 = scalar_select %p594, %s31, 1
        %s596 = smul.addr %s595, 16
        %s597 = smul.addr %s596, 4
        %s598 = scalar_lea.vmem %s13, %s597
      $region80: #{dino_wrapper_forward.1} parent=31 // pred_fallthru
        _
      // Predicated region
      $region81: #{dino_wrapper_forward.1} parent=31 // pred_check
        %p599 = pneg %p409
      $region82: #{dino_wrapper_forward.1} parent=31 // pred_check_branch
        %601 = sbr.rel (%p599) target = $region84
      $region83: #{dino_wrapper_forward.1} parent=31 // pred_region
        %p602 = scmp.lt.s32.totalorder %s31, 1
        %s603 = scalar_select %p602, %s31, 1
        %s604 = scalar_lea.vmem %s14, %s603
      $region84: #{dino_wrapper_forward.1} parent=31 // pred_fallthru
        _
    $region32: #{dino_wrapper_forward.1} parent=5 // pred_fallthru
      _
    %p605 = scmp.le.s32.totalorder 1, %s23
    %p606 = scmp.lt.s32.totalorder %s23, 5
    %p607 = pnand %p605, %p606
    %p608 = pneg %p607
    // Predicated region
    $region85: #{dino_wrapper_forward.1} parent=5 // pred_check
      _
    $region86: #{dino_wrapper_forward.1} parent=5 // pred_check_branch
      %610 = sbr.rel (%p607) target = $region88
    $region87: #{dino_wrapper_forward.1} parent=5 // pred_region
      %s611 = ssub.s32 %s23, 1
      %s612 = smul.u32 2, %s32
      %p613 = scmp.lt.s32.totalorder %s612, 3
      %s614 = scalar_select %p613, %s612, 3
      %s615 = smul.addr %s614, 2
      %s616 = smul.addr %s615, 4
      %s617 = scalar_lea.vmem %s0, %s616
      %p618 = pneg %p61
      %p619 = pneg %p58
      %p620 = pneg %p82
      %p621 = pneg %p79
      %p622 = pneg %p103
      %p623 = pneg %p100
      %p624 = scmp.lt.s32.totalorder %s33, 1
      %s625 = scalar_select %p624, %s33, 1
      %s626 = scalar_lea.vmem %s3, %s625
      %p627 = pneg %p129
      %p628 = pneg %p126
      %p629 = scmp.lt.s32.totalorder %s33, 1
      %s630 = scalar_select %p629, %s33, 1
      %s631 = scalar_lea.vmem %s4, %s630
      %p632 = pneg %p155
      %p633 = pneg %p152
      %p634 = scmp.lt.s32.totalorder %s33, 1
      %s635 = scalar_select %p634, %s33, 1
      %s636 = smul.addr %s635, 48
      %s637 = smul.addr %s636, 4
      %s638 = scalar_lea.vmem %s5, %s637
      %p639 = pneg %p181
      %p640 = pneg %p178
      %p641 = scmp.lt.s32.totalorder %s33, 1
      %s642 = scalar_select %p641, %s33, 1
      %s643 = smul.addr %s642, 3
      %s644 = scalar_lea.vmem %s6, %s643
      %p645 = pneg %p207
      %p646 = pneg %p204
      %p647 = scmp.lt.s32.totalorder %s33, 1
      %s648 = scalar_select %p647, %s33, 1
      %s649 = smul.addr %s648, 16
      %s650 = smul.addr %s649, 4
      %s651 = scalar_lea.vmem %s7, %s650
      %p652 = pneg %p233
      %p653 = pneg %p230
      %p654 = scmp.lt.s32.totalorder %s33, 1
      %s655 = scalar_select %p654, %s33, 1
      %s656 = scalar_lea.vmem %s8, %s655
      %p657 = pneg %p259
      %p658 = pneg %p256
      %p659 = scmp.lt.s32.totalorder %s33, 1
      %s660 = scalar_select %p659, %s33, 1
      %s661 = scalar_lea.vmem %s9, %s660
      %p662 = pneg %p285
      %p663 = pneg %p282
      %p664 = scmp.lt.s32.totalorder %s33, 1
      %s665 = scalar_select %p664, %s33, 1
      %s666 = scalar_lea.vmem %s10, %s665
      %p667 = pneg %p311
      %p668 = pneg %p308
      %p669 = scmp.lt.s32.totalorder %s33, 1
      %s670 = scalar_select %p669, %s33, 1
      %s671 = smul.addr %s670, 16
      %s672 = smul.addr %s671, 4
      %s673 = scalar_lea.vmem %s11, %s672
      %p674 = pneg %p337
      %p675 = pneg %p334
      %p676 = scmp.lt.s32.totalorder %s33, 1
      %s677 = scalar_select %p676, %s33, 1
      %s678 = scalar_lea.vmem %s12, %s677
      %p679 = pneg %p363
      %p680 = pneg %p360
      %p681 = scmp.lt.s32.totalorder %s33, 1
      %s682 = scalar_select %p681, %s33, 1
      %s683 = smul.addr %s682, 16
      %s684 = smul.addr %s683, 4
      %s685 = scalar_lea.vmem %s13, %s684
      %p686 = pneg %p389
      %p687 = pneg %p386
      %p688 = scmp.lt.s32.totalorder %s33, 1
      %s689 = scalar_select %p688, %s33, 1
      %s690 = scalar_lea.vmem %s14, %s689
      %p691 = pneg %p415
      %p692 = pneg %p412
      %p693 = pneg %p436
      %p694 = pneg %p433
      %p695 = pneg %p457
      %p696 = pneg %p454
      %p697 = pneg %p483
      %p698 = pneg %p480
      %s699 = smul.u32 2, %s32
      %p700 = scmp.lt.s32.totalorder %s699, 3
      %s701 = scalar_select %p700, %s699, 3
      %s702 = smul.addr %s701, 8
      %s703 = scalar_lea.vmem %s17, %s702
      %s704 = smul.u32 2, %s32
      %p705 = scmp.lt.s32.totalorder %s704, 3
      %s706 = scalar_select %p705, %s704, 3
      %s707 = smul.addr %s706, 2
      %s708 = smul.addr %s707, 4
      %s709 = scalar_lea.vmem %s0, %s708
      %s710 = smul.u32 2, %s32
      %p711 = scmp.lt.s32.totalorder %s33, 1
      %s712 = scalar_select %p711, %s33, 1
      %s713 = scalar_lea.vmem %s3, %s712
      %p714 = scmp.lt.s32.totalorder %s33, 1
      %s715 = scalar_select %p714, %s33, 1
      %s716 = scalar_lea.vmem %s4, %s715
      %p717 = scmp.lt.s32.totalorder %s33, 1
      %s718 = scalar_select %p717, %s33, 1
      %s719 = smul.addr %s718, 48
      %s720 = smul.addr %s719, 4
      %s721 = scalar_lea.vmem %s5, %s720
      %p722 = scmp.lt.s32.totalorder %s33, 1
      %s723 = scalar_select %p722, %s33, 1
      %s724 = smul.addr %s723, 3
      %s725 = scalar_lea.vmem %s6, %s724
      %p726 = scmp.lt.s32.totalorder %s33, 1
      %s727 = scalar_select %p726, %s33, 1
      %s728 = smul.addr %s727, 16
      %s729 = smul.addr %s728, 4
      %s730 = scalar_lea.vmem %s7, %s729
      %p731 = scmp.lt.s32.totalorder %s33, 1
      %s732 = scalar_select %p731, %s33, 1
      %s733 = scalar_lea.vmem %s8, %s732
      %p734 = scmp.lt.s32.totalorder %s33, 1
      %s735 = scalar_select %p734, %s33, 1
      %s736 = scalar_lea.vmem %s9, %s735
      %p737 = scmp.lt.s32.totalorder %s33, 1
      %s738 = scalar_select %p737, %s33, 1
      %s739 = scalar_lea.vmem %s10, %s738
      %p740 = scmp.lt.s32.totalorder %s33, 1
      %s741 = scalar_select %p740, %s33, 1
      %s742 = smul.addr %s741, 16
      %s743 = smul.addr %s742, 4
      %s744 = scalar_lea.vmem %s11, %s743
      %p745 = scmp.lt.s32.totalorder %s33, 1
      %s746 = scalar_select %p745, %s33, 1
      %s747 = scalar_lea.vmem %s12, %s746
      %p748 = scmp.lt.s32.totalorder %s33, 1
      %s749 = scalar_select %p748, %s33, 1
      %s750 = smul.addr %s749, 16
      %s751 = smul.addr %s750, 4
      %s752 = scalar_lea.vmem %s13, %s751
      %p753 = scmp.lt.s32.totalorder %s33, 1
      %s754 = scalar_select %p753, %s33, 1
      %s755 = scalar_lea.vmem %s14, %s754
      %s756 = smul.u32 2, %s32
      %p757 = scmp.lt.s32.totalorder %s756, 3
      %s758 = scalar_select %p757, %s756, 3
      %s759 = smul.addr %s758, 8
      %s760 = scalar_lea.vmem %s17, %s759
      %s761 = smul.u32 2, %s32
      %p763 = scmp.eq.s32.totalorder %s33, 0
      // Predicated region
      $region89: #{dino_wrapper_forward.1} parent=87 // pred_check
        %p764 = pneg %p763
      $region90: #{dino_wrapper_forward.1} parent=87 // pred_check_branch
        %766 = sbr.rel (%p764) target = $region92
      $region91: #{dino_wrapper_forward.1} parent=87 // pred_region
        %v767 = vld [vmem:[%s709] sm:$0xff]
        %v768 = vld [vmem:[%s709 + $0x8] sm:$0xff]
        %v769 = vld [vmem:[%s2] sm:$0xf]
        %v770 = vld [vmem:[%s2 + $0x4] sm:$0xf]
        %v771 = vld [vmem:[%s2 + $0x8] sm:$0xf]
        %v772 = vld [vmem:[%s2 + $0xc] sm:$0xf]
        %v773 = vld [vmem:[%s2 + $0x10] sm:$0xf]
        %v774 = vld [vmem:[%s2 + $0x14] sm:$0xf]
        %v775 = vld [vmem:[%s2 + $0x18] sm:$0xf]
        %v776 = vld [vmem:[%s2 + $0x1c] sm:$0xf]
        %v777 = vld [vmem:[%s2 + $0x20] sm:$0xf]
        %v778 = vld [vmem:[%s2 + $0x24] sm:$0xf]
        %v779 = vld [vmem:[%s2 + $0x28] sm:$0xf]
        %v780 = vld [vmem:[%s2 + $0x2c] sm:$0xf]
        %v781 = vld [vmem:[%s2 + $0x30] sm:$0xf]
        %v782 = vld [vmem:[%s2 + $0x34] sm:$0xf]
        %v783 = vld [vmem:[%s2 + $0x38] sm:$0xf]
        %v784 = vld [vmem:[%s2 + $0x3c] sm:$0xf]
        %v785 = vld [vmem:[%s2 + $0x40] sm:$0xf]
        %v786 = vld [vmem:[%s2 + $0x44] sm:$0xf]
        %v787 = vld [vmem:[%s2 + $0x48] sm:$0xf]
        %v788 = vld [vmem:[%s2 + $0x4c] sm:$0xf]
        %v789 = vld [vmem:[%s2 + $0x50] sm:$0xf]
        %v790 = vld [vmem:[%s2 + $0x54] sm:$0xf]
        %v791 = vld [vmem:[%s2 + $0x58] sm:$0xf]
        %v792 = vld [vmem:[%s2 + $0x5c] sm:$0xf]
        %v793 = vld [vmem:[%s2 + $0x60] sm:$0xf]
        %v794 = vld [vmem:[%s2 + $0x64] sm:$0xf]
        %v795 = vld [vmem:[%s2 + $0x68] sm:$0xf]
        %v796 = vld [vmem:[%s2 + $0x6c] sm:$0xf]
        %v797 = vld [vmem:[%s2 + $0x70] sm:$0xf]
        %v798 = vld [vmem:[%s2 + $0x74] sm:$0xf]
        %v799 = vld [vmem:[%s2 + $0x78] sm:$0xf]
        %v800 = vld [vmem:[%s2 + $0x7c] sm:$0xf]
        %v803 = vunpack.c.l.b16 %v767
        %v804 = vunpack.c.h.b16 %v767
        %v805 = vunpack.c.l.b16 %v768
        %v806 = vunpack.c.h.b16 %v768
        %v807 = vpack.c.b16 %v805, %v803
        %v808 = vpack.c.b16 %v806, %v804
        %v843 = vunpack.c.l.b16 %v769
        %v844 = vunpack.c.l.b16 %v770
        %v845 = vunpack.c.l.b16 %v771
        %v846 = vunpack.c.l.b16 %v772
        %v847 = vunpack.c.l.b16 %v773
        %v848 = vunpack.c.l.b16 %v774
        %v849 = vunpack.c.l.b16 %v775
        %v850 = vunpack.c.l.b16 %v776
        %v851 = vunpack.c.l.b16 %v777
        %v852 = vunpack.c.l.b16 %v778
        %v853 = vunpack.c.l.b16 %v779
        %v854 = vunpack.c.l.b16 %v780
        %v855 = vunpack.c.l.b16 %v781
        %v856 = vunpack.c.l.b16 %v782
        %v857 = vunpack.c.l.b16 %v783
        %v858 = vunpack.c.l.b16 %v784
        %v859 = vunpack.c.l.b16 %v785
        %v860 = vunpack.c.l.b16 %v786
        %v861 = vunpack.c.l.b16 %v787
        %v862 = vunpack.c.l.b16 %v788
        %v863 = vunpack.c.l.b16 %v789
        %v864 = vunpack.c.l.b16 %v790
        %v865 = vunpack.c.l.b16 %v791
        %v866 = vunpack.c.l.b16 %v792
        %v867 = vunpack.c.l.b16 %v793
        %v868 = vunpack.c.l.b16 %v794
        %v869 = vunpack.c.l.b16 %v795
        %v870 = vunpack.c.l.b16 %v796
        %v871 = vunpack.c.l.b16 %v797
        %v872 = vunpack.c.l.b16 %v798
        %v873 = vunpack.c.l.b16 %v799
        %v874 = vunpack.c.l.b16 %v800
        %v875 = vpack.c.b16 %v844, %v843
        %v876 = vpack.c.b16 %v846, %v845
        %v877 = vpack.c.b16 %v848, %v847
        %v878 = vpack.c.b16 %v850, %v849
        %v879 = vpack.c.b16 %v852, %v851
        %v880 = vpack.c.b16 %v854, %v853
        %v881 = vpack.c.b16 %v856, %v855
        %v882 = vpack.c.b16 %v858, %v857
        %v883 = vpack.c.b16 %v860, %v859
        %v884 = vpack.c.b16 %v862, %v861
        %v885 = vpack.c.b16 %v864, %v863
        %v886 = vpack.c.b16 %v866, %v865
        %v887 = vpack.c.b16 %v868, %v867
        %v888 = vpack.c.b16 %v870, %v869
        %v889 = vpack.c.b16 %v872, %v871
        %v890 = vpack.c.b16 %v874, %v873
        %907 = vmatprep.subr.bf16.mxu0 0
        %908 = vmatpush1.bf16.msra.mxu0 %v882
        %909 = vmatprep.subr.bf16.mxu0 0
        %910 = vmatpush1.bf16.msra.mxu0 %v881
        %911 = vmatprep.subr.bf16.mxu0 0
        %912 = vmatpush1.bf16.msra.mxu0 %v880
        %913 = vmatprep.subr.bf16.mxu0 0
        %914 = vmatpush1.bf16.msra.mxu0 %v879
        %915 = vmatprep.subr.bf16.mxu0 0
        %916 = vmatpush1.bf16.msra.mxu0 %v878
        %917 = vmatprep.subr.bf16.mxu0 0
        %918 = vmatpush1.bf16.msra.mxu0 %v877
        %919 = vmatprep.subr.bf16.mxu0 0
        %920 = vmatpush1.bf16.msra.mxu0 %v876
        %921 = vmatprep.subr.bf16.mxu0 0
        %922 = vmatpush1.bf16.msra.mxu0 %v875
        %923 = vmatprep.subr.bf16.mxu0 0
        %924 = vmatpush2.bf16.msra.mxu0 %v890
        %925 = vmatprep.subr.bf16.mxu0 0
        %926 = vmatpush2.bf16.msra.mxu0 %v889
        %927 = vmatprep.subr.bf16.mxu0 0
        %928 = vmatpush2.bf16.msra.mxu0 %v888
        %929 = vmatprep.subr.bf16.mxu0 0
        %930 = vmatpush2.bf16.msra.mxu0 %v887
        %931 = vmatprep.subr.bf16.mxu0 0
        %932 = vmatpush2.bf16.msra.mxu0 %v886
        %933 = vmatprep.subr.bf16.mxu0 0
        %934 = vmatpush2.bf16.msra.mxu0 %v885
        %935 = vmatprep.subr.bf16.mxu0 0
        %936 = vmatpush2.bf16.msra.mxu0 %v884
        %937 = vmatprep.subr.bf16.mxu0 0
        %938 = vmatpush2.bf16.msra.mxu0 %v883
        %939 = vmatprep.mubr.bf16.mxu0 %v808
        %940 = vmatmul.mubr.bf16.gmra.mxu0 %v807
        %v941 = vpop.f32.mrf.mxu0
        %v942 = vadd.f32 0.0, %v941
        %v943 = vpop.f32.mrf.mxu0
        %v944 = vpop.f32.mrf.mxu0
        %v945 = vadd.f32 0.0, %v944
        %v946 = vpop.f32.mrf.mxu0
        %947 = vdwg.mxu0
        %v948 = vld [vmem:[%s1] sm:$0xff]
        %v949 = vadd.f32 %v942, %v948
        %v950 = vadd.f32 %v945, %v948
        %951 = vst [vmem:[#allocation2] sm:$0xff] %v949
        %952 = vst [vmem:[#allocation2 + $0x8] sm:$0xff] %v950
      $region92: #{dino_wrapper_forward.1} parent=87 // pred_fallthru
        _
      %v953 = vld [vmem:[#allocation2] sm:$0xff]
      %v954 = vld [vmem:[#allocation2 + $0x8] sm:$0xff]
      %v955 = vlaneseq
      %v956 = vand.u32 %v955, 127
      %vm957 = vcmp.lt.s32.totalorder %v956, 32
      %v958 = vsel %vm957, 1, 0
      %v959 = vcvt.s32.f32 %v958
      %vm960 = vcmp.lt.s32.totalorder %v956, 5
      %v961 = vsel %vm960, 0.0, -1e+30
      %v962 = vld [vmem:[%s713] sm:$0x1]
      %v963 = vld [vmem:[%s716] sm:$0x1]
      %964 = vadd.xlane.f32.xlu0 %v953
      %v965 = vpop.xlane.xlu0 %964
      %966 = vadd.xlane.f32.xlu0 %v954
      %v967 = vpop.xlane.xlu0 %966
      %v968 = vmul.f32 %v965, 0.03125
      %v969 = vmul.f32 %v967, 0.03125
      %v970 = vsub.f32 %v953, %v968
      %v971 = vsub.f32 %v954, %v969
      %v972 = vmul.f32 %v970, %v959
      %v973 = vmul.f32 %v971, %v959
      %v974 = vmul.f32 %v972, %v972
      %v975 = vmul.f32 %v973, %v973
      %976 = vadd.xlane.f32.xlu0 %v974
      %v977 = vpop.xlane.xlu0 %976
      %978 = vadd.xlane.f32.xlu0 %v975
      %v979 = vpop.xlane.xlu0 %978
      %v980 = vmul.f32 %v977, 0.03125
      %v981 = vmul.f32 %v979, 0.03125
      %v982 = vadd.f32 %v980, 1e-12
      %v983 = vadd.f32 %v981, 1e-12
      %v984 = vrsqrt.pop %v982
      %v985 = vrsqrt.pop %v983
      %v986 = vmul.f32 %v972, %v984
      %v987 = vmul.f32 %v973, %v985
      %v989 = vlaneseq
      %v990 = vshrl.u32 %v989, 7
      %v991 = vsub.s32 0, %v990
      %v992 = vrot.slane %v962, %v991
      %v994 = vmul.f32 %v986, %v992
      %v995 = vmul.f32 %v987, %v992
      %v997 = vlaneseq
      %v998 = vshrl.u32 %v997, 7
      %v999 = vsub.s32 0, %v998
      %v1000 = vrot.slane %v963, %v999
      %v1002 = vadd.f32 %v994, %v1000
      %v1003 = vadd.f32 %v995, %v1000
      %v1004 = vpack.c.bf16 %v1003, %v1002
      %v1005 = vld [vmem:[%s721] sm:$0xff]
      %v1006 = vld [vmem:[%s721 + $0x8] sm:$0xf]
      %v1007 = vld [vmem:[%s721 + $0xc] sm:$0xff]
      %v1008 = vld [vmem:[%s721 + $0x14] sm:$0xf]
      %v1009 = vld [vmem:[%s721 + $0x18] sm:$0xff]
      %v1010 = vld [vmem:[%s721 + $0x20] sm:$0xf]
      %v1011 = vld [vmem:[%s721 + $0x24] sm:$0xff]
      %v1012 = vld [vmem:[%s721 + $0x2c] sm:$0xf]
      %v1013 = vld [vmem:[%s721 + $0x30] sm:$0xff]
      %v1014 = vld [vmem:[%s721 + $0x38] sm:$0xf]
      %v1015 = vld [vmem:[%s721 + $0x3c] sm:$0xff]
      %v1016 = vld [vmem:[%s721 + $0x44] sm:$0xf]
      %v1017 = vld [vmem:[%s721 + $0x48] sm:$0xff]
      %v1018 = vld [vmem:[%s721 + $0x50] sm:$0xf]
      %v1019 = vld [vmem:[%s721 + $0x54] sm:$0xff]
      %v1020 = vld [vmem:[%s721 + $0x5c] sm:$0xf]
      %v1021 = vld [vmem:[%s721 + $0x60] sm:$0xff]
      %v1022 = vld [vmem:[%s721 + $0x68] sm:$0xf]
      %v1023 = vld [vmem:[%s721 + $0x6c] sm:$0xff]
      %v1024 = vld [vmem:[%s721 + $0x74] sm:$0xf]
      %v1025 = vld [vmem:[%s721 + $0x78] sm:$0xff]
      %v1026 = vld [vmem:[%s721 + $0x80] sm:$0xf]
      %v1027 = vld [vmem:[%s721 + $0x84] sm:$0xff]
      %v1028 = vld [vmem:[%s721 + $0x8c] sm:$0xf]
      %v1029 = vld [vmem:[%s721 + $0x90] sm:$0xff]
      %v1030 = vld [vmem:[%s721 + $0x98] sm:$0xf]
      %v1031 = vld [vmem:[%s721 + $0x9c] sm:$0xff]
      %v1032 = vld [vmem:[%s721 + $0xa4] sm:$0xf]
      %v1033 = vld [vmem:[%s721 + $0xa8] sm:$0xff]
      %v1034 = vld [vmem:[%s721 + $0xb0] sm:$0xf]
      %v1035 = vld [vmem:[%s721 + $0xb4] sm:$0xff]
      %v1036 = vld [vmem:[%s721 + $0xbc] sm:$0xf]
      %v1037 = vld [vmem:[%s725] sm:$0x7]
      %v1039 = vlaneseq
      %v1040 = vshrl.u32 %v1039, 7
      %v1041 = vsub.s32 0, %v1040
      %v1042 = vrot.slane %v1037, %v1041
      %v1043 = vlaneseq
      %v1044 = vshrl.u32 %v1043, 7
      %v1045 = vsub.s32 1, %v1044
      %v1046 = vrot.slane %v1037, %v1045
      %v1047 = vlaneseq
      %v1048 = vshrl.u32 %v1047, 7
      %v1049 = vsub.s32 2, %v1048
      %v1050 = vrot.slane %v1037, %v1049
      %v1086 = vunpack.c.l.b16 %v1005
      %v1087 = vunpack.c.h.b16 %v1005
      %v1088 = vunpack.c.l.b16 %v1006
      %v1089 = vunpack.c.l.b16 %v1007
      %v1090 = vunpack.c.h.b16 %v1007
      %v1091 = vunpack.c.l.b16 %v1008
      %v1092 = vunpack.c.l.b16 %v1009
      %v1093 = vunpack.c.h.b16 %v1009
      %v1094 = vunpack.c.l.b16 %v1010
      %v1095 = vunpack.c.l.b16 %v1011
      %v1096 = vunpack.c.h.b16 %v1011
      %v1097 = vunpack.c.l.b16 %v1012
      %v1098 = vunpack.c.l.b16 %v1013
      %v1099 = vunpack.c.h.b16 %v1013
      %v1100 = vunpack.c.l.b16 %v1014
      %v1101 = vunpack.c.l.b16 %v1015
      %v1102 = vunpack.c.h.b16 %v1015
      %v1103 = vunpack.c.l.b16 %v1016
      %v1104 = vunpack.c.l.b16 %v1017
      %v1105 = vunpack.c.h.b16 %v1017
      %v1106 = vunpack.c.l.b16 %v1018
      %v1107 = vunpack.c.l.b16 %v1019
      %v1108 = vunpack.c.h.b16 %v1019
      %v1109 = vunpack.c.l.b16 %v1020
      %v1110 = vunpack.c.l.b16 %v1021
      %v1111 = vunpack.c.h.b16 %v1021
      %v1112 = vunpack.c.l.b16 %v1022
      %v1113 = vunpack.c.l.b16 %v1023
      %v1114 = vunpack.c.h.b16 %v1023
      %v1115 = vunpack.c.l.b16 %v1024
      %v1116 = vunpack.c.l.b16 %v1025
      %v1117 = vunpack.c.h.b16 %v1025
      %v1118 = vunpack.c.l.b16 %v1026
      %v1119 = vunpack.c.l.b16 %v1027
      %v1120 = vunpack.c.h.b16 %v1027
      %v1121 = vunpack.c.l.b16 %v1028
      %v1122 = vunpack.c.l.b16 %v1029
      %v1123 = vunpack.c.h.b16 %v1029
      %v1124 = vunpack.c.l.b16 %v1030
      %v1125 = vunpack.c.l.b16 %v1031
      %v1126 = vunpack.c.h.b16 %v1031
      %v1127 = vunpack.c.l.b16 %v1032
      %v1128 = vunpack.c.l.b16 %v1033
      %v1129 = vunpack.c.h.b16 %v1033
      %v1130 = vunpack.c.l.b16 %v1034
      %v1131 = vunpack.c.l.b16 %v1035
      %v1132 = vunpack.c.h.b16 %v1035
      %v1133 = vunpack.c.l.b16 %v1036
      %v1134 = vpack.c.b16 %v1089, %v1086
      %v1135 = vpack.c.b16 %v1090, %v1087
      %v1136 = vpack.c.b16 %v1091, %v1088
      %v1137 = vpack.c.b16 %v1095, %v1092
      %v1138 = vpack.c.b16 %v1096, %v1093
      %v1139 = vpack.c.b16 %v1097, %v1094
      %v1140 = vpack.c.b16 %v1101, %v1098
      %v1141 = vpack.c.b16 %v1102, %v1099
      %v1142 = vpack.c.b16 %v1103, %v1100
      %v1143 = vpack.c.b16 %v1107, %v1104
      %v1144 = vpack.c.b16 %v1108, %v1105
      %v1145 = vpack.c.b16 %v1109, %v1106
      %v1146 = vpack.c.b16 %v1113, %v1110
      %v1147 = vpack.c.b16 %v1114, %v1111
      %v1148 = vpack.c.b16 %v1115, %v1112
      %v1149 = vpack.c.b16 %v1119, %v1116
      %v1150 = vpack.c.b16 %v1120, %v1117
      %v1151 = vpack.c.b16 %v1121, %v1118
      %v1152 = vpack.c.b16 %v1125, %v1122
      %v1153 = vpack.c.b16 %v1126, %v1123
      %v1154 = vpack.c.b16 %v1127, %v1124
      %v1155 = vpack.c.b16 %v1131, %v1128
      %v1156 = vpack.c.b16 %v1132, %v1129
      %v1157 = vpack.c.b16 %v1133, %v1130
      %1182 = vmatprep.subr.bf16.mxu0 %v1156
      %1183 = vmatpush1.bf16.msra.mxu0 %v1155
      %1184 = vmatprep.subr.bf16.mxu0 %v1153
      %1185 = vmatpush1.bf16.msra.mxu0 %v1152
      %1186 = vmatprep.subr.bf16.mxu0 %v1150
      %1187 = vmatpush1.bf16.msra.mxu0 %v1149
      %1188 = vmatprep.subr.bf16.mxu0 %v1147
      %1189 = vmatpush1.bf16.msra.mxu0 %v1146
      %1190 = vmatprep.subr.bf16.mxu0 %v1144
      %1191 = vmatpush1.bf16.msra.mxu0 %v1143
      %1192 = vmatprep.subr.bf16.mxu0 %v1141
      %1193 = vmatpush1.bf16.msra.mxu0 %v1140
      %1194 = vmatprep.subr.bf16.mxu0 %v1138
      %1195 = vmatpush1.bf16.msra.mxu0 %v1137
      %1196 = vmatprep.subr.bf16.mxu0 %v1135
      %1197 = vmatpush1.bf16.msra.mxu0 %v1134
      %1198 = vmatprep.subr.bf16.mxu0 0
      %1199 = vmatpush2.bf16.msra.mxu0 0
      %1200 = vmatprep.subr.bf16.mxu0 0
      %1201 = vmatpush2.bf16.msra.mxu0 0
      %1202 = vmatprep.subr.bf16.mxu0 0
      %1203 = vmatpush2.bf16.msra.mxu0 0
      %1204 = vmatprep.subr.bf16.mxu0 0
      %1205 = vmatpush2.bf16.msra.mxu0 0
      %1206 = vmatprep.subr.bf16.mxu0 0
      %1207 = vmatpush2.bf16.msra.mxu0 0
      %1208 = vmatprep.subr.bf16.mxu0 0
      %1209 = vmatpush2.bf16.msra.mxu0 0
      %1210 = vmatprep.subr.bf16.mxu0 0
      %1211 = vmatpush2.bf16.msra.mxu0 0
      %1212 = vmatprep.subr.bf16.mxu0 0
      %1213 = vmatpush2.bf16.msra.mxu0 0
      %1214 = vmatprep.mubr.bf16.mxu0 0
      %1215 = vmatmul.mubr.bf16.gmra.mxu0 %v1004
      %v1216 = vpop.f32.mrf.mxu0
      %v1217 = vadd.f32 %v1042, %v1216
      %v1218 = vpop.f32.mrf.mxu0
      %v1219 = vadd.f32 %v1046, %v1218
      %v1220 = vpop.f32.mrf.mxu0
      %v1221 = vadd.f32 %v1042, %v1220
      %v1222 = vpop.f32.mrf.mxu0
      %v1223 = vadd.f32 %v1046, %v1222
      %1224 = vdwg.mxu0
      %1225 = vmatprep.subr.bf16.mxu0 0
      %1226 = vmatpush1.bf16.msra.mxu0 %v1157
      %1227 = vmatprep.subr.bf16.mxu0 0
      %1228 = vmatpush1.bf16.msra.mxu0 %v1154
      %1229 = vmatprep.subr.bf16.mxu0 0
      %1230 = vmatpush1.bf16.msra.mxu0 %v1151
      %1231 = vmatprep.subr.bf16.mxu0 0
      %1232 = vmatpush1.bf16.msra.mxu0 %v1148
      %1233 = vmatprep.subr.bf16.mxu0 0
      %1234 = vmatpush1.bf16.msra.mxu0 %v1145
      %1235 = vmatprep.subr.bf16.mxu0 0
      %1236 = vmatpush1.bf16.msra.mxu0 %v1142
      %1237 = vmatprep.subr.bf16.mxu0 0
      %1238 = vmatpush1.bf16.msra.mxu0 %v1139
      %1239 = vmatprep.subr.bf16.mxu0 0
      %1240 = vmatpush1.bf16.msra.mxu0 %v1136
      %1241 = vmatprep.subr.bf16.mxu0 0
      %1242 = vmatpush2.bf16.msra.mxu0 0
      %1243 = vmatprep.subr.bf16.mxu0 0
      %1244 = vmatpush2.bf16.msra.mxu0 0
      %1245 = vmatprep.subr.bf16.mxu0 0
      %1246 = vmatpush2.bf16.msra.mxu0 0
      %1247 = vmatprep.subr.bf16.mxu0 0
      %1248 = vmatpush2.bf16.msra.mxu0 0
      %1249 = vmatprep.subr.bf16.mxu0 0
      %1250 = vmatpush2.bf16.msra.mxu0 0
      %1251 = vmatprep.subr.bf16.mxu0 0
      %1252 = vmatpush2.bf16.msra.mxu0 0
      %1253 = vmatprep.subr.bf16.mxu0 0
      %1254 = vmatpush2.bf16.msra.mxu0 0
      %1255 = vmatprep.subr.bf16.mxu0 0
      %1256 = vmatpush2.bf16.msra.mxu0 0
      %1257 = vmatprep.mubr.bf16.mxu0 0
      %1258 = vmatmul.mubr.bf16.gmra.mxu0 %v1004
      %v1259 = vpop.f32.mrf.mxu0
      %v1260 = vadd.f32 %v1050, %v1259
      %v1261 = vpop.f32.mrf.mxu0
      %v1262 = vpop.f32.mrf.mxu0
      %v1263 = vadd.f32 %v1050, %v1262
      %v1264 = vpop.f32.mrf.mxu0
      %1265 = vdwg.mxu0
      %v1266 = vpack.c.bf16 %v1219, %v1219
      %v1267 = vpack.c.bf16 %v1223, %v1223
      %v1268 = vpack.c.bf16 %v1260, %v1260
      %v1269 = vpack.c.bf16 %v1263, %v1263
      %vm1270 = vcmp.ge.s32.totalorder %v956, 0
      %vm1271 = vcmp.lt.s32.totalorder %v956, 16
      %vm1272 = vmand %vm1270, %vm1271
      %v1273 = vsel %vm1272, 1, 0
      %v1274 = vcvt.s32.f32 %v1273
      %v1275 = vmul.f32 %v1217, %v1274
      %v1276 = vmul.f32 %v1221, %v1274
      %v1277 = vpack.c.bf16 %v1275, %v1275
      %v1278 = vpack.c.bf16 %v1276, %v1276
      %1279 = vmatprep.subr.bf16.mxu0 0
      %1280 = vmatpush1.bf16.xpose.msra.mxu0 0
      %1281 = vmatprep.subr.bf16.mxu0 0
      %1282 = vmatpush1.bf16.xpose.msra.mxu0 0
      %1283 = vmatprep.subr.bf16.mxu0 0
      %1284 = vmatpush1.bf16.xpose.msra.mxu0 0
      %1285 = vmatprep.subr.bf16.mxu0 0
      %1286 = vmatpush1.bf16.xpose.msra.mxu0 0
      %1287 = vmatprep.subr.bf16.mxu0 0
      %1288 = vmatpush1.bf16.xpose.msra.mxu0 0
      %1289 = vmatprep.subr.bf16.mxu0 0
      %1290 = vmatpush1.bf16.xpose.msra.mxu0 0
      %1291 = vmatprep.subr.bf16.mxu0 0
      %1292 = vmatpush1.bf16.xpose.msra.mxu0 0
      %1293 = vmatprep.subr.bf16.mxu0 0
      %1294 = vmatpush1.bf16.xpose.msra.mxu0 %v1266
      %1295 = vmatprep.subr.bf16.mxu0 0
      %1296 = vmatpush2.bf16.xpose.msra.mxu0 0
      %1297 = vmatprep.subr.bf16.mxu0 0
      %1298 = vmatpush2.bf16.xpose.msra.mxu0 0
      %1299 = vmatprep.subr.bf16.mxu0 0
      %1300 = vmatpush2.bf16.xpose.msra.mxu0 0
      %1301 = vmatprep.subr.bf16.mxu0 0
      %1302 = vmatpush2.bf16.xpose.msra.mxu0 0
      %1303 = vmatprep.subr.bf16.mxu0 0
      %1304 = vmatpush2.bf16.xpose.msra.mxu0 0
      %1305 = vmatprep.subr.bf16.mxu0 0
      %1306 = vmatpush2.bf16.xpose.msra.mxu0 0
      %1307 = vmatprep.subr.bf16.mxu0 0
      %1308 = vmatpush2.bf16.xpose.msra.mxu0 0
      %1309 = vmatprep.subr.bf16.mxu0 0
      %1310 = vmatpush2.bf16.xpose.msra.mxu0 0
      %1311 = vmatprep.mubr.bf16.mxu0 0
      %1312 = vmatmul.mubr.bf16.gmra.mxu0 %v1277
      %v1313 = vpop.f32.mrf.mxu0
      %v1314 = vadd.f32 0.0, %v1313
      %v1315 = vpop.f32.mrf.mxu0
      %v1316 = vpop.f32.mrf.mxu0
      %v1317 = vpop.f32.mrf.mxu0
      %1318 = vdwg.mxu0
      %1319 = vmatprep.subr.bf16.mxu0 0
      %1320 = vmatpush1.bf16.xpose.msra.mxu0 0
      %1321 = vmatprep.subr.bf16.mxu0 0
      %1322 = vmatpush1.bf16.xpose.msra.mxu0 0
      %1323 = vmatprep.subr.bf16.mxu0 0
      %1324 = vmatpush1.bf16.xpose.msra.mxu0 0
      %1325 = vmatprep.subr.bf16.mxu0 0
      %1326 = vmatpush1.bf16.xpose.msra.mxu0 0
      %1327 = vmatprep.subr.bf16.mxu0 0
      %1328 = vmatpush1.bf16.xpose.msra.mxu0 0
      %1329 = vmatprep.subr.bf16.mxu0 0
      %1330 = vmatpush1.bf16.xpose.msra.mxu0 0
      %1331 = vmatprep.subr.bf16.mxu0 0
      %1332 = vmatpush1.bf16.xpose.msra.mxu0 0
      %1333 = vmatprep.subr.bf16.mxu0 0
      %1334 = vmatpush1.bf16.xpose.msra.mxu0 %v1267
      %1335 = vmatprep.subr.bf16.mxu0 0
      %1336 = vmatpush2.bf16.xpose.msra.mxu0 0
      %1337 = vmatprep.subr.bf16.mxu0 0
      %1338 = vmatpush2.bf16.xpose.msra.mxu0 0
      %1339 = vmatprep.subr.bf16.mxu0 0
      %1340 = vmatpush2.bf16.xpose.msra.mxu0 0
      %1341 = vmatprep.subr.bf16.mxu0 0
      %1342 = vmatpush2.bf16.xpose.msra.mxu0 0
      %1343 = vmatprep.subr.bf16.mxu0 0
      %1344 = vmatpush2.bf16.xpose.msra.mxu0 0
      %1345 = vmatprep.subr.bf16.mxu0 0
      %1346 = vmatpush2.bf16.xpose.msra.mxu0 0
      %1347 = vmatprep.subr.bf16.mxu0 0
      %1348 = vmatpush2.bf16.xpose.msra.mxu0 0
      %1349 = vmatprep.subr.bf16.mxu0 0
      %1350 = vmatpush2.bf16.xpose.msra.mxu0 0
      %1351 = vmatprep.mubr.bf16.mxu0 0
      %1352 = vmatmul.mubr.bf16.gmra.mxu0 %v1278
      %v1353 = vpop.f32.mrf.mxu0
      %v1354 = vadd.f32 0.0, %v1353
      %v1355 = vpop.f32.mrf.mxu0
      %v1356 = vpop.f32.mrf.mxu0
      %v1357 = vpop.f32.mrf.mxu0
      %1358 = vdwg.mxu0
      %v1359 = vmul.f32 %v1314, 0.25
      %v1360 = vmul.f32 %v1354, 0.25
      %v1361 = vadd.f32 %v1359, %v961
      %v1362 = vadd.f32 %v1360, %v961
      %vm1363 = vcmask 64512
      %v1364 = vsel %vm1363, %v1361, -inf
      %1365 = vmax.xlane.f32.xlu0 %v1364
      %v1366 = vpop.xlane.xlu0 %1365
      %v1367 = vsel %vm1363, %v1362, -inf
      %1368 = vmax.xlane.f32.xlu0 %v1367
      %v1369 = vpop.xlane.xlu0 %1368
      %v1370 = vsub.f32 %v1361, %v1366
      %v1371 = vsub.f32 %v1362, %v1369
      %v1372 = vmul.f32 %v1370, 1.442695
      %v1373 = vpow.pop %v1372
      %v1374 = vmul.f32 %v1371, 1.442695
      %v1375 = vpow.pop %v1374
      %v1376 = vsel %vm1363, %v1373, 0.0
      %1377 = vadd.xlane.f32.xlu0 %v1376
      %v1378 = vpop.xlane.xlu0 %1377
      %v1379 = vsel %vm1363, %v1375, 0.0
      %1380 = vadd.xlane.f32.xlu0 %v1379
      %v1381 = vpop.xlane.xlu0 %1380
      %v1382 = vrcp.pop %v1378
      %v1383 = vmul.f32 %v1373, %v1382
      %v1384 = vrcp.pop %v1381
      %v1385 = vmul.f32 %v1375, %v1384
      %v1386 = vpack.c.bf16 %v1383, %v1383
      %v1387 = vpack.c.bf16 %v1385, %v1385
      %v1389 = vsel %vm1363, %v1386, 0
      %vm1391 = vcmask 1043456
      %v1393 = vsel %vm1391, %v1268, 0
      %1395 = vmatprep.subr.bf16.mxu0 0
      %1396 = vmatpush1.bf16.msra.mxu0 0
      %1397 = vmatprep.subr.bf16.mxu0 0
      %1398 = vmatpush1.bf16.msra.mxu0 0
      %1399 = vmatprep.subr.bf16.mxu0 0
      %1400 = vmatpush1.bf16.msra.mxu0 0
      %1401 = vmatprep.subr.bf16.mxu0 0
      %1402 = vmatpush1.bf16.msra.mxu0 0
      %1403 = vmatprep.subr.bf16.mxu0 0
      %1404 = vmatpush1.bf16.msra.mxu0 0
      %1405 = vmatprep.subr.bf16.mxu0 0
      %1406 = vmatpush1.bf16.msra.mxu0 0
      %1407 = vmatprep.subr.bf16.mxu0 0
      %1408 = vmatpush1.bf16.msra.mxu0 0
      %1409 = vmatprep.subr.bf16.mxu0 0
      %1410 = vmatpush1.bf16.msra.mxu0 %v1393
      %1411 = vmatprep.subr.bf16.mxu0 0
      %1412 = vmatpush2.bf16.msra.mxu0 0
      %1413 = vmatprep.subr.bf16.mxu0 0
      %1414 = vmatpush2.bf16.msra.mxu0 0
      %1415 = vmatprep.subr.bf16.mxu0 0
      %1416 = vmatpush2.bf16.msra.mxu0 0
      %1417 = vmatprep.subr.bf16.mxu0 0
      %1418 = vmatpush2.bf16.msra.mxu0 0
      %1419 = vmatprep.subr.bf16.mxu0 0
      %1420 = vmatpush2.bf16.msra.mxu0 0
      %1421 = vmatprep.subr.bf16.mxu0 0
      %1422 = vmatpush2.bf16.msra.mxu0 0
      %1423 = vmatprep.subr.bf16.mxu0 0
      %1424 = vmatpush2.bf16.msra.mxu0 0
      %1425 = vmatprep.subr.bf16.mxu0 0
      %1426 = vmatpush2.bf16.msra.mxu0 0
      %1427 = vmatprep.mubr.bf16.mxu0 0
      %1428 = vmatmul.mubr.bf16.gmra.mxu0 %v1389
      %v1429 = vpop.f32.mrf.mxu0
      %v1430 = vadd.f32 0.0, %v1429
      %v1431 = vpop.f32.mrf.mxu0
      %v1432 = vpop.f32.mrf.mxu0
      %v1433 = vpop.f32.mrf.mxu0
      %1434 = vdwg.mxu0
      %v1436 = vsel %vm1363, %v1387, 0
      %v1439 = vsel %vm1391, %v1269, 0
      %1441 = vmatprep.subr.bf16.mxu0 0
      %1442 = vmatpush1.bf16.msra.mxu0 0
      %1443 = vmatprep.subr.bf16.mxu0 0
      %1444 = vmatpush1.bf16.msra.mxu0 0
      %1445 = vmatprep.subr.bf16.mxu0 0
      %1446 = vmatpush1.bf16.msra.mxu0 0
      %1447 = vmatprep.subr.bf16.mxu0 0
      %1448 = vmatpush1.bf16.msra.mxu0 0
      %1449 = vmatprep.subr.bf16.mxu0 0
      %1450 = vmatpush1.bf16.msra.mxu0 0
      %1451 = vmatprep.subr.bf16.mxu0 0
      %1452 = vmatpush1.bf16.msra.mxu0 0
      %1453 = vmatprep.subr.bf16.mxu0 0
      %1454 = vmatpush1.bf16.msra.mxu0 0
      %1455 = vmatprep.subr.bf16.mxu0 0
      %1456 = vmatpush1.bf16.msra.mxu0 %v1439
      %1457 = vmatprep.subr.bf16.mxu0 0
      %1458 = vmatpush2.bf16.msra.mxu0 0
      %1459 = vmatprep.subr.bf16.mxu0 0
      %1460 = vmatpush2.bf16.msra.mxu0 0
      %1461 = vmatprep.subr.bf16.mxu0 0
      %1462 = vmatpush2.bf16.msra.mxu0 0
      %1463 = vmatprep.subr.bf16.mxu0 0
      %1464 = vmatpush2.bf16.msra.mxu0 0
      %1465 = vmatprep.subr.bf16.mxu0 0
      %1466 = vmatpush2.bf16.msra.mxu0 0
      %1467 = vmatprep.subr.bf16.mxu0 0
      %1468 = vmatpush2.bf16.msra.mxu0 0
      %1469 = vmatprep.subr.bf16.mxu0 0
      %1470 = vmatpush2.bf16.msra.mxu0 0
      %1471 = vmatprep.subr.bf16.mxu0 0
      %1472 = vmatpush2.bf16.msra.mxu0 0
      %1473 = vmatprep.mubr.bf16.mxu0 0
      %1474 = vmatmul.mubr.bf16.gmra.mxu0 %v1436
      %v1475 = vpop.f32.mrf.mxu0
      %v1476 = vadd.f32 0.0, %v1475
      %v1477 = vpop.f32.mrf.mxu0
      %v1478 = vpop.f32.mrf.mxu0
      %v1479 = vpop.f32.mrf.mxu0
      %1480 = vdwg.mxu0
      %v1481 = vmul.f32 %v1430, %v1274
      %v1482 = vmul.f32 %v1476, %v1274
      %v1483 = vadd.f32 %v1481, 0.0
      %v1484 = vadd.f32 %v1482, 0.0
      %vm1485 = vcmp.ge.s32.totalorder %v956, 16
      %vm1486 = vmand %vm1485, %vm957
      %v1487 = vsel %vm1486, 1, 0
      %v1488 = vcvt.s32.f32 %v1487
      %v1489 = vmul.f32 %v1217, %v1488
      %v1490 = vmul.f32 %v1221, %v1488
      %v1491 = vpack.c.bf16 %v1489, %v1489
      %v1492 = vpack.c.bf16 %v1490, %v1490
      %1493 = vmatprep.subr.bf16.mxu0 0
      %1494 = vmatpush1.bf16.xpose.msra.mxu0 0
      %1495 = vmatprep.subr.bf16.mxu0 0
      %1496 = vmatpush1.bf16.xpose.msra.mxu0 0
      %1497 = vmatprep.subr.bf16.mxu0 0
      %1498 = vmatpush1.bf16.xpose.msra.mxu0 0
      %1499 = vmatprep.subr.bf16.mxu0 0
      %1500 = vmatpush1.bf16.xpose.msra.mxu0 0
      %1501 = vmatprep.subr.bf16.mxu0 0
      %1502 = vmatpush1.bf16.xpose.msra.mxu0 0
      %1503 = vmatprep.subr.bf16.mxu0 0
      %1504 = vmatpush1.bf16.xpose.msra.mxu0 0
      %1505 = vmatprep.subr.bf16.mxu0 0
      %1506 = vmatpush1.bf16.xpose.msra.mxu0 0
      %1507 = vmatprep.subr.bf16.mxu0 0
      %1508 = vmatpush1.bf16.xpose.msra.mxu0 %v1266
      %1509 = vmatprep.subr.bf16.mxu0 0
      %1510 = vmatpush2.bf16.xpose.msra.mxu0 0
      %1511 = vmatprep.subr.bf16.mxu0 0
      %1512 = vmatpush2.bf16.xpose.msra.mxu0 0
      %1513 = vmatprep.subr.bf16.mxu0 0
      %1514 = vmatpush2.bf16.xpose.msra.mxu0 0
      %1515 = vmatprep.subr.bf16.mxu0 0
      %1516 = vmatpush2.bf16.xpose.msra.mxu0 0
      %1517 = vmatprep.subr.bf16.mxu0 0
      %1518 = vmatpush2.bf16.xpose.msra.mxu0 0
      %1519 = vmatprep.subr.bf16.mxu0 0
      %1520 = vmatpush2.bf16.xpose.msra.mxu0 0
      %1521 = vmatprep.subr.bf16.mxu0 0
      %1522 = vmatpush2.bf16.xpose.msra.mxu0 0
      %1523 = vmatprep.subr.bf16.mxu0 0
      %1524 = vmatpush2.bf16.xpose.msra.mxu0 0
      %1525 = vmatprep.mubr.bf16.mxu0 0
      %1526 = vmatmul.mubr.bf16.gmra.mxu0 %v1491
      %v1527 = vpop.f32.mrf.mxu0
      %v1528 = vadd.f32 0.0, %v1527
      %v1529 = vpop.f32.mrf.mxu0
      %v1530 = vpop.f32.mrf.mxu0
      %v1531 = vpop.f32.mrf.mxu0
      %1532 = vdwg.mxu0
      %1533 = vmatprep.subr.bf16.mxu0 0
      %1534 = vmatpush1.bf16.xpose.msra.mxu0 0
      %1535 = vmatprep.subr.bf16.mxu0 0
      %1536 = vmatpush1.bf16.xpose.msra.mxu0 0
      %1537 = vmatprep.subr.bf16.mxu0 0
      %1538 = vmatpush1.bf16.xpose.msra.mxu0 0
      %1539 = vmatprep.subr.bf16.mxu0 0
      %1540 = vmatpush1.bf16.xpose.msra.mxu0 0
      %1541 = vmatprep.subr.bf16.mxu0 0
      %1542 = vmatpush1.bf16.xpose.msra.mxu0 0
      %1543 = vmatprep.subr.bf16.mxu0 0
      %1544 = vmatpush1.bf16.xpose.msra.mxu0 0
      %1545 = vmatprep.subr.bf16.mxu0 0
      %1546 = vmatpush1.bf16.xpose.msra.mxu0 0
      %1547 = vmatprep.subr.bf16.mxu0 0
      %1548 = vmatpush1.bf16.xpose.msra.mxu0 %v1267
      %1549 = vmatprep.subr.bf16.mxu0 0
      %1550 = vmatpush2.bf16.xpose.msra.mxu0 0
      %1551 = vmatprep.subr.bf16.mxu0 0
      %1552 = vmatpush2.bf16.xpose.msra.mxu0 0
      %1553 = vmatprep.subr.bf16.mxu0 0
      %1554 = vmatpush2.bf16.xpose.msra.mxu0 0
      %1555 = vmatprep.subr.bf16.mxu0 0
      %1556 = vmatpush2.bf16.xpose.msra.mxu0 0
      %1557 = vmatprep.subr.bf16.mxu0 0
      %1558 = vmatpush2.bf16.xpose.msra.mxu0 0
      %1559 = vmatprep.subr.bf16.mxu0 0
      %1560 = vmatpush2.bf16.xpose.msra.mxu0 0
      %1561 = vmatprep.subr.bf16.mxu0 0
      %1562 = vmatpush2.bf16.xpose.msra.mxu0 0
      %1563 = vmatprep.subr.bf16.mxu0 0
      %1564 = vmatpush2.bf16.xpose.msra.mxu0 0
      %1565 = vmatprep.mubr.bf16.mxu0 0
      %1566 = vmatmul.mubr.bf16.gmra.mxu0 %v1492
      %v1567 = vpop.f32.mrf.mxu0
      %v1568 = vadd.f32 0.0, %v1567
      %v1569 = vpop.f32.mrf.mxu0
      %v1570 = vpop.f32.mrf.mxu0
      %v1571 = vpop.f32.mrf.mxu0
      %1572 = vdwg.mxu0
      %v1573 = vmul.f32 %v1528, 0.25
      %v1574 = vmul.f32 %v1568, 0.25
      %v1575 = vadd.f32 %v1573, %v961
      %v1576 = vadd.f32 %v1574, %v961
      %v1577 = vsel %vm1363, %v1575, -inf
      %1578 = vmax.xlane.f32.xlu0 %v1577
      %v1579 = vpop.xlane.xlu0 %1578
      %v1580 = vsel %vm1363, %v1576, -inf
      %1581 = vmax.xlane.f32.xlu0 %v1580
      %v1582 = vpop.xlane.xlu0 %1581
      %v1583 = vsub.f32 %v1575, %v1579
      %v1584 = vsub.f32 %v1576, %v1582
      %v1585 = vmul.f32 %v1583, 1.442695
      %v1586 = vpow.pop %v1585
      %v1587 = vmul.f32 %v1584, 1.442695
      %v1588 = vpow.pop %v1587
      %v1589 = vsel %vm1363, %v1586, 0.0
      %1590 = vadd.xlane.f32.xlu0 %v1589
      %v1591 = vpop.xlane.xlu0 %1590
      %v1592 = vsel %vm1363, %v1588, 0.0
      %1593 = vadd.xlane.f32.xlu0 %v1592
      %v1594 = vpop.xlane.xlu0 %1593
      %v1595 = vrcp.pop %v1591
      %v1596 = vmul.f32 %v1586, %v1595
      %v1597 = vrcp.pop %v1594
      %v1598 = vmul.f32 %v1588, %v1597
      %v1599 = vpack.c.bf16 %v1596, %v1596
      %v1600 = vpack.c.bf16 %v1598, %v1598
      %v1602 = vsel %vm1363, %v1599, 0
      %1604 = vmatprep.subr.bf16.mxu0 0
      %1605 = vmatpush1.bf16.msra.mxu0 0
      %1606 = vmatprep.subr.bf16.mxu0 0
      %1607 = vmatpush1.bf16.msra.mxu0 0
      %1608 = vmatprep.subr.bf16.mxu0 0
      %1609 = vmatpush1.bf16.msra.mxu0 0
      %1610 = vmatprep.subr.bf16.mxu0 0
      %1611 = vmatpush1.bf16.msra.mxu0 0
      %1612 = vmatprep.subr.bf16.mxu0 0
      %1613 = vmatpush1.bf16.msra.mxu0 0
      %1614 = vmatprep.subr.bf16.mxu0 0
      %1615 = vmatpush1.bf16.msra.mxu0 0
      %1616 = vmatprep.subr.bf16.mxu0 0
      %1617 = vmatpush1.bf16.msra.mxu0 0
      %1618 = vmatprep.subr.bf16.mxu0 0
      %1619 = vmatpush1.bf16.msra.mxu0 %v1393
      %1620 = vmatprep.subr.bf16.mxu0 0
      %1621 = vmatpush2.bf16.msra.mxu0 0
      %1622 = vmatprep.subr.bf16.mxu0 0
      %1623 = vmatpush2.bf16.msra.mxu0 0
      %1624 = vmatprep.subr.bf16.mxu0 0
      %1625 = vmatpush2.bf16.msra.mxu0 0
      %1626 = vmatprep.subr.bf16.mxu0 0
      %1627 = vmatpush2.bf16.msra.mxu0 0
      %1628 = vmatprep.subr.bf16.mxu0 0
      %1629 = vmatpush2.bf16.msra.mxu0 0
      %1630 = vmatprep.subr.bf16.mxu0 0
      %1631 = vmatpush2.bf16.msra.mxu0 0
      %1632 = vmatprep.subr.bf16.mxu0 0
      %1633 = vmatpush2.bf16.msra.mxu0 0
      %1634 = vmatprep.subr.bf16.mxu0 0
      %1635 = vmatpush2.bf16.msra.mxu0 0
      %1636 = vmatprep.mubr.bf16.mxu0 0
      %1637 = vmatmul.mubr.bf16.gmra.mxu0 %v1602
      %v1638 = vpop.f32.mrf.mxu0
      %v1639 = vadd.f32 0.0, %v1638
      %v1640 = vpop.f32.mrf.mxu0
      %v1641 = vpop.f32.mrf.mxu0
      %v1642 = vpop.f32.mrf.mxu0
      %1643 = vdwg.mxu0
      %v1645 = vsel %vm1363, %v1600, 0
      %1647 = vmatprep.subr.bf16.mxu0 0
      %1648 = vmatpush1.bf16.msra.mxu0 0
      %1649 = vmatprep.subr.bf16.mxu0 0
      %1650 = vmatpush1.bf16.msra.mxu0 0
      %1651 = vmatprep.subr.bf16.mxu0 0
      %1652 = vmatpush1.bf16.msra.mxu0 0
      %1653 = vmatprep.subr.bf16.mxu0 0
      %1654 = vmatpush1.bf16.msra.mxu0 0
      %1655 = vmatprep.subr.bf16.mxu0 0
      %1656 = vmatpush1.bf16.msra.mxu0 0
      %1657 = vmatprep.subr.bf16.mxu0 0
      %1658 = vmatpush1.bf16.msra.mxu0 0
      %1659 = vmatprep.subr.bf16.mxu0 0
      %1660 = vmatpush1.bf16.msra.mxu0 0
      %1661 = vmatprep.subr.bf16.mxu0 0
      %1662 = vmatpush1.bf16.msra.mxu0 %v1439
      %1663 = vmatprep.subr.bf16.mxu0 0
      %1664 = vmatpush2.bf16.msra.mxu0 0
      %1665 = vmatprep.subr.bf16.mxu0 0
      %1666 = vmatpush2.bf16.msra.mxu0 0
      %1667 = vmatprep.subr.bf16.mxu0 0
      %1668 = vmatpush2.bf16.msra.mxu0 0
      %1669 = vmatprep.subr.bf16.mxu0 0
      %1670 = vmatpush2.bf16.msra.mxu0 0
      %1671 = vmatprep.subr.bf16.mxu0 0
      %1672 = vmatpush2.bf16.msra.mxu0 0
      %1673 = vmatprep.subr.bf16.mxu0 0
      %1674 = vmatpush2.bf16.msra.mxu0 0
      %1675 = vmatprep.subr.bf16.mxu0 0
      %1676 = vmatpush2.bf16.msra.mxu0 0
      %1677 = vmatprep.subr.bf16.mxu0 0
      %1678 = vmatpush2.bf16.msra.mxu0 0
      %1679 = vmatprep.mubr.bf16.mxu0 0
      %1680 = vmatmul.mubr.bf16.gmra.mxu0 %v1645
      %v1681 = vpop.f32.mrf.mxu0
      %v1682 = vadd.f32 0.0, %v1681
      %v1683 = vpop.f32.mrf.mxu0
      %v1684 = vpop.f32.mrf.mxu0
      %v1685 = vpop.f32.mrf.mxu0
      %1686 = vdwg.mxu0
      %v1687 = vmul.f32 %v1639, %v1488
      %v1688 = vmul.f32 %v1682, %v1488
      %v1689 = vadd.f32 %v1483, %v1687
      %v1690 = vadd.f32 %v1484, %v1688
      %v1691 = vpack.c.bf16 %v1690, %v1689
      %v1692 = vld [vmem:[%s730] sm:$0xf]
      %v1693 = vld [vmem:[%s730 + $0x4] sm:$0xf]
      %v1694 = vld [vmem:[%s730 + $0x8] sm:$0xf]
      %v1695 = vld [vmem:[%s730 + $0xc] sm:$0xf]
      %v1696 = vld [vmem:[%s730 + $0x10] sm:$0xf]
      %v1697 = vld [vmem:[%s730 + $0x14] sm:$0xf]
      %v1698 = vld [vmem:[%s730 + $0x18] sm:$0xf]
      %v1699 = vld [vmem:[%s730 + $0x1c] sm:$0xf]
      %v1700 = vld [vmem:[%s730 + $0x20] sm:$0xf]
      %v1701 = vld [vmem:[%s730 + $0x24] sm:$0xf]
      %v1702 = vld [vmem:[%s730 + $0x28] sm:$0xf]
      %v1703 = vld [vmem:[%s730 + $0x2c] sm:$0xf]
      %v1704 = vld [vmem:[%s730 + $0x30] sm:$0xf]
      %v1705 = vld [vmem:[%s730 + $0x34] sm:$0xf]
      %v1706 = vld [vmem:[%s730 + $0x38] sm:$0xf]
      %v1707 = vld [vmem:[%s730 + $0x3c] sm:$0xf]
      %v1708 = vld [vmem:[%s733] sm:$0x1]
      %v1710 = vlaneseq
      %v1711 = vshrl.u32 %v1710, 7
      %v1712 = vsub.s32 0, %v1711
      %v1713 = vrot.slane %v1708, %v1712
      %v1731 = vunpack.c.l.b16 %v1692
      %v1732 = vunpack.c.l.b16 %v1693
      %v1733 = vunpack.c.l.b16 %v1694
      %v1734 = vunpack.c.l.b16 %v1695
      %v1735 = vunpack.c.l.b16 %v1696
      %v1736 = vunpack.c.l.b16 %v1697
      %v1737 = vunpack.c.l.b16 %v1698
      %v1738 = vunpack.c.l.b16 %v1699
      %v1739 = vunpack.c.l.b16 %v1700
      %v1740 = vunpack.c.l.b16 %v1701
      %v1741 = vunpack.c.l.b16 %v1702
      %v1742 = vunpack.c.l.b16 %v1703
      %v1743 = vunpack.c.l.b16 %v1704
      %v1744 = vunpack.c.l.b16 %v1705
      %v1745 = vunpack.c.l.b16 %v1706
      %v1746 = vunpack.c.l.b16 %v1707
      %v1747 = vpack.c.b16 %v1732, %v1731
      %v1748 = vpack.c.b16 %v1734, %v1733
      %v1749 = vpack.c.b16 %v1736, %v1735
      %v1750 = vpack.c.b16 %v1738, %v1737
      %v1751 = vpack.c.b16 %v1740, %v1739
      %v1752 = vpack.c.b16 %v1742, %v1741
      %v1753 = vpack.c.b16 %v1744, %v1743
      %v1754 = vpack.c.b16 %v1746, %v1745
      %1763 = vmatprep.subr.bf16.mxu0 0
      %1764 = vmatpush1.bf16.msra.mxu0 %v1754
      %1765 = vmatprep.subr.bf16.mxu0 0
      %1766 = vmatpush1.bf16.msra.mxu0 %v1753
      %1767 = vmatprep.subr.bf16.mxu0 0
      %1768 = vmatpush1.bf16.msra.mxu0 %v1752
      %1769 = vmatprep.subr.bf16.mxu0 0
      %1770 = vmatpush1.bf16.msra.mxu0 %v1751
      %1771 = vmatprep.subr.bf16.mxu0 0
      %1772 = vmatpush1.bf16.msra.mxu0 %v1750
      %1773 = vmatprep.subr.bf16.mxu0 0
      %1774 = vmatpush1.bf16.msra.mxu0 %v1749
      %1775 = vmatprep.subr.bf16.mxu0 0
      %1776 = vmatpush1.bf16.msra.mxu0 %v1748
      %1777 = vmatprep.subr.bf16.mxu0 0
      %1778 = vmatpush1.bf16.msra.mxu0 %v1747
      %1779 = vmatprep.subr.bf16.mxu0 0
      %1780 = vmatpush2.bf16.msra.mxu0 0
      %1781 = vmatprep.subr.bf16.mxu0 0
      %1782 = vmatpush2.bf16.msra.mxu0 0
      %1783 = vmatprep.subr.bf16.mxu0 0
      %1784 = vmatpush2.bf16.msra.mxu0 0
      %1785 = vmatprep.subr.bf16.mxu0 0
      %1786 = vmatpush2.bf16.msra.mxu0 0
      %1787 = vmatprep.subr.bf16.mxu0 0
      %1788 = vmatpush2.bf16.msra.mxu0 0
      %1789 = vmatprep.subr.bf16.mxu0 0
      %1790 = vmatpush2.bf16.msra.mxu0 0
      %1791 = vmatprep.subr.bf16.mxu0 0
      %1792 = vmatpush2.bf16.msra.mxu0 0
      %1793 = vmatprep.subr.bf16.mxu0 0
      %1794 = vmatpush2.bf16.msra.mxu0 0
      %1795 = vmatprep.mubr.bf16.mxu0 0
      %1796 = vmatmul.mubr.bf16.gmra.mxu0 %v1691
      %v1797 = vpop.f32.mrf.mxu0
      %v1798 = vadd.f32 %v1713, %v1797
      %v1799 = vpop.f32.mrf.mxu0
      %v1800 = vpop.f32.mrf.mxu0
      %v1801 = vadd.f32 %v1713, %v1800
      %v1802 = vpop.f32.mrf.mxu0
      %1803 = vdwg.mxu0
      %v1804 = vadd.f32 %v953, %v1798
      %v1805 = vadd.f32 %v954, %v1801
      %v1806 = vld [vmem:[%s736] sm:$0x1]
      %v1807 = vld [vmem:[%s739] sm:$0x1]
      %1808 = vadd.xlane.f32.xlu0 %v1804
      %v1809 = vpop.xlane.xlu0 %1808
      %1810 = vadd.xlane.f32.xlu0 %v1805
      %v1811 = vpop.xlane.xlu0 %1810
      %v1812 = vmul.f32 %v1809, 0.03125
      %v1813 = vmul.f32 %v1811, 0.03125
      %v1814 = vsub.f32 %v1804, %v1812
      %v1815 = vsub.f32 %v1805, %v1813
      %v1816 = vmul.f32 %v1814, %v959
      %v1817 = vmul.f32 %v1815, %v959
      %v1818 = vmul.f32 %v1816, %v1816
      %v1819 = vmul.f32 %v1817, %v1817
      %1820 = vadd.xlane.f32.xlu0 %v1818
      %v1821 = vpop.xlane.xlu0 %1820
      %1822 = vadd.xlane.f32.xlu0 %v1819
      %v1823 = vpop.xlane.xlu0 %1822
      %v1824 = vmul.f32 %v1821, 0.03125
      %v1825 = vmul.f32 %v1823, 0.03125
      %v1826 = vadd.f32 %v1824, 1e-12
      %v1827 = vadd.f32 %v1825, 1e-12
      %v1828 = vrsqrt.pop %v1826
      %v1829 = vrsqrt.pop %v1827
      %v1830 = vmul.f32 %v1816, %v1828
      %v1831 = vmul.f32 %v1817, %v1829
      %v1833 = vlaneseq
      %v1834 = vshrl.u32 %v1833, 7
      %v1835 = vsub.s32 0, %v1834
      %v1836 = vrot.slane %v1806, %v1835
      %v1838 = vmul.f32 %v1830, %v1836
      %v1839 = vmul.f32 %v1831, %v1836
      %v1841 = vlaneseq
      %v1842 = vshrl.u32 %v1841, 7
      %v1843 = vsub.s32 0, %v1842
      %v1844 = vrot.slane %v1807, %v1843
      %v1846 = vadd.f32 %v1838, %v1844
      %v1847 = vadd.f32 %v1839, %v1844
      %v1848 = vpack.c.bf16 %v1847, %v1846
      %v1849 = vld [vmem:[%s744] sm:$0xf]
      %v1850 = vld [vmem:[%s744 + $0x4] sm:$0xf]
      %v1851 = vld [vmem:[%s744 + $0x8] sm:$0xf]
      %v1852 = vld [vmem:[%s744 + $0xc] sm:$0xf]
      %v1853 = vld [vmem:[%s744 + $0x10] sm:$0xf]
      %v1854 = vld [vmem:[%s744 + $0x14] sm:$0xf]
      %v1855 = vld [vmem:[%s744 + $0x18] sm:$0xf]
      %v1856 = vld [vmem:[%s744 + $0x1c] sm:$0xf]
      %v1857 = vld [vmem:[%s744 + $0x20] sm:$0xf]
      %v1858 = vld [vmem:[%s744 + $0x24] sm:$0xf]
      %v1859 = vld [vmem:[%s744 + $0x28] sm:$0xf]
      %v1860 = vld [vmem:[%s744 + $0x2c] sm:$0xf]
      %v1861 = vld [vmem:[%s744 + $0x30] sm:$0xf]
      %v1862 = vld [vmem:[%s744 + $0x34] sm:$0xf]
      %v1863 = vld [vmem:[%s744 + $0x38] sm:$0xf]
      %v1864 = vld [vmem:[%s744 + $0x3c] sm:$0xf]
      %v1865 = vld [vmem:[%s747] sm:$0x1]
      %v1867 = vlaneseq
      %v1868 = vshrl.u32 %v1867, 7
      %v1869 = vsub.s32 0, %v1868
      %v1870 = vrot.slane %v1865, %v1869
      %v1888 = vunpack.c.l.b16 %v1849
      %v1889 = vunpack.c.l.b16 %v1850
      %v1890 = vunpack.c.l.b16 %v1851
      %v1891 = vunpack.c.l.b16 %v1852
      %v1892 = vunpack.c.l.b16 %v1853
      %v1893 = vunpack.c.l.b16 %v1854
      %v1894 = vunpack.c.l.b16 %v1855
      %v1895 = vunpack.c.l.b16 %v1856
      %v1896 = vunpack.c.l.b16 %v1857
      %v1897 = vunpack.c.l.b16 %v1858
      %v1898 = vunpack.c.l.b16 %v1859
      %v1899 = vunpack.c.l.b16 %v1860
      %v1900 = vunpack.c.l.b16 %v1861
      %v1901 = vunpack.c.l.b16 %v1862
      %v1902 = vunpack.c.l.b16 %v1863
      %v1903 = vunpack.c.l.b16 %v1864
      %v1904 = vpack.c.b16 %v1889, %v1888
      %v1905 = vpack.c.b16 %v1891, %v1890
      %v1906 = vpack.c.b16 %v1893, %v1892
      %v1907 = vpack.c.b16 %v1895, %v1894
      %v1908 = vpack.c.b16 %v1897, %v1896
      %v1909 = vpack.c.b16 %v1899, %v1898
      %v1910 = vpack.c.b16 %v1901, %v1900
      %v1911 = vpack.c.b16 %v1903, %v1902
      %1920 = vmatprep.subr.bf16.mxu0 0
      %1921 = vmatpush1.bf16.msra.mxu0 %v1911
      %1922 = vmatprep.subr.bf16.mxu0 0
      %1923 = vmatpush1.bf16.msra.mxu0 %v1910
      %1924 = vmatprep.subr.bf16.mxu0 0
      %1925 = vmatpush1.bf16.msra.mxu0 %v1909
      %1926 = vmatprep.subr.bf16.mxu0 0
      %1927 = vmatpush1.bf16.msra.mxu0 %v1908
      %1928 = vmatprep.subr.bf16.mxu0 0
      %1929 = vmatpush1.bf16.msra.mxu0 %v1907
      %1930 = vmatprep.subr.bf16.mxu0 0
      %1931 = vmatpush1.bf16.msra.mxu0 %v1906
      %1932 = vmatprep.subr.bf16.mxu0 0
      %1933 = vmatpush1.bf16.msra.mxu0 %v1905
      %1934 = vmatprep.subr.bf16.mxu0 0
      %1935 = vmatpush1.bf16.msra.mxu0 %v1904
      %1936 = vmatprep.subr.bf16.mxu0 0
      %1937 = vmatpush2.bf16.msra.mxu0 0
      %1938 = vmatprep.subr.bf16.mxu0 0
      %1939 = vmatpush2.bf16.msra.mxu0 0
      %1940 = vmatprep.subr.bf16.mxu0 0
      %1941 = vmatpush2.bf16.msra.mxu0 0
      %1942 = vmatprep.subr.bf16.mxu0 0
      %1943 = vmatpush2.bf16.msra.mxu0 0
      %1944 = vmatprep.subr.bf16.mxu0 0
      %1945 = vmatpush2.bf16.msra.mxu0 0
      %1946 = vmatprep.subr.bf16.mxu0 0
      %1947 = vmatpush2.bf16.msra.mxu0 0
      %1948 = vmatprep.subr.bf16.mxu0 0
      %1949 = vmatpush2.bf16.msra.mxu0 0
      %1950 = vmatprep.subr.bf16.mxu0 0
      %1951 = vmatpush2.bf16.msra.mxu0 0
      %1952 = vmatprep.mubr.bf16.mxu0 0
      %1953 = vmatmul.mubr.bf16.gmra.mxu0 %v1848
      %v1954 = vpop.f32.mrf.mxu0
      %v1955 = vadd.f32 %v1870, %v1954
      %v1956 = vpop.f32.mrf.mxu0
      %v1957 = vpop.f32.mrf.mxu0
      %v1958 = vadd.f32 %v1870, %v1957
      %v1959 = vpop.f32.mrf.mxu0
      %1960 = vdwg.mxu0
      %v1961 = vmul.f32 %v1955, 0.70710677
      %v1962 = vmul.f32 %v1958, 0.70710677
      %v1963 = vand.u32 2147483647, %v1961
      %v1964 = vand.u32 2147483647, %v1962
      %v1965 = vmul.f32 %v1963, 0.3275911
      %v1966 = vmul.f32 %v1964, 0.3275911
      %v1967 = vadd.f32 %v1965, 1.0
      %v1968 = vadd.f32 %v1966, 1.0
      %v1969 = vrcp.pop %v1967
      %v1970 = vrcp.pop %v1968
      %v1971 = vmul.f32 %v1967, %v1969
      %v1972 = vmul.f32 %v1968, %v1970
      %v1973 = vsub.f32 2.0, %v1971
      %v1974 = vsub.f32 2.0, %v1972
      %v1975 = vmul.f32 %v1969, %v1973
      %v1976 = vmul.f32 %v1970, %v1974
      %v1977 = vmul.f32 %v1975, 1.0614054
      %v1978 = vmul.f32 %v1976, 1.0614054
      %v1979 = vadd.f32 %v1977, -1.4531521
      %v1980 = vadd.f32 %v1978, -1.4531521
      %v1981 = vmul.f32 %v1979, %v1975
      %v1982 = vmul.f32 %v1980, %v1976
      %v1983 = vadd.f32 %v1981, 1.4214138
      %v1984 = vadd.f32 %v1982, 1.4214138
      %v1985 = vmul.f32 %v1983, %v1975
      %v1986 = vmul.f32 %v1984, %v1976
      %v1987 = vadd.f32 %v1985, -0.28449672
      %v1988 = vadd.f32 %v1986, -0.28449672
      %v1989 = vmul.f32 %v1987, %v1975
      %v1990 = vmul.f32 %v1988, %v1976
      %v1991 = vadd.f32 %v1989, 0.2548296
      %v1992 = vadd.f32 %v1990, 0.2548296
      %v1993 = vmul.f32 %v1991, %v1975
      %v1994 = vmul.f32 %v1992, %v1976
      %v1995 = vsub.f32 0.0, %v1963
      %v1996 = vsub.f32 0.0, %v1964
      %v1997 = vmul.f32 %v1995, %v1963
      %v1998 = vmul.f32 %v1996, %v1964
      %v1999 = vmul.f32 %v1997, 1.442695
      %v2000 = vpow.pop %v1999
      %v2001 = vmul.f32 %v1998, 1.442695
      %v2002 = vpow.pop %v2001
      %v2003 = vmul.f32 %v1993, %v2000
      %v2004 = vmul.f32 %v1994, %v2002
      %v2005 = vsub.f32 1.0, %v2003
      %v2006 = vsub.f32 1.0, %v2004
      %vm2007 = vcmp.lt.f32.partialorder %v1961, 0.0
      %vm2008 = vcmp.lt.f32.partialorder %v1962, 0.0
      %v2009 = vsub.f32 0.0, %v2005
      %v2010 = vsub.f32 0.0, %v2006
      %v2011 = vsel %vm2007, %v2009, %v2005
      %v2012 = vsel %vm2008, %v2010, %v2006
      %v2013 = vmul.f32 %v1955, 0.5
      %v2014 = vmul.f32 %v1958, 0.5
      %v2015 = vadd.f32 %v2011, 1.0
      %v2016 = vadd.f32 %v2012, 1.0
      %v2017 = vmul.f32 %v2013, %v2015
      %v2018 = vmul.f32 %v2014, %v2016
      %v2019 = vpack.c.bf16 %v2018, %v2017
      %v2020 = vld [vmem:[%s752] sm:$0xf]
      %v2021 = vld [vmem:[%s752 + $0x4] sm:$0xf]
      %v2022 = vld [vmem:[%s752 + $0x8] sm:$0xf]
      %v2023 = vld [vmem:[%s752 + $0xc] sm:$0xf]
      %v2024 = vld [vmem:[%s752 + $0x10] sm:$0xf]
      %v2025 = vld [vmem:[%s752 + $0x14] sm:$0xf]
      %v2026 = vld [vmem:[%s752 + $0x18] sm:$0xf]
      %v2027 = vld [vmem:[%s752 + $0x1c] sm:$0xf]
      %v2028 = vld [vmem:[%s752 + $0x20] sm:$0xf]
      %v2029 = vld [vmem:[%s752 + $0x24] sm:$0xf]
      %v2030 = vld [vmem:[%s752 + $0x28] sm:$0xf]
      %v2031 = vld [vmem:[%s752 + $0x2c] sm:$0xf]
      %v2032 = vld [vmem:[%s752 + $0x30] sm:$0xf]
      %v2033 = vld [vmem:[%s752 + $0x34] sm:$0xf]
      %v2034 = vld [vmem:[%s752 + $0x38] sm:$0xf]
      %v2035 = vld [vmem:[%s752 + $0x3c] sm:$0xf]
      %v2052 = vunpack.c.l.b16 %v2020
      %v2053 = vunpack.c.l.b16 %v2021
      %v2054 = vunpack.c.l.b16 %v2022
      %v2055 = vunpack.c.l.b16 %v2023
      %v2056 = vunpack.c.l.b16 %v2024
      %v2057 = vunpack.c.l.b16 %v2025
      %v2058 = vunpack.c.l.b16 %v2026
      %v2059 = vunpack.c.l.b16 %v2027
      %v2060 = vunpack.c.l.b16 %v2028
      %v2061 = vunpack.c.l.b16 %v2029
      %v2062 = vunpack.c.l.b16 %v2030
      %v2063 = vunpack.c.l.b16 %v2031
      %v2064 = vunpack.c.l.b16 %v2032
      %v2065 = vunpack.c.l.b16 %v2033
      %v2066 = vunpack.c.l.b16 %v2034
      %v2067 = vunpack.c.l.b16 %v2035
      %v2068 = vpack.c.b16 %v2053, %v2052
      %v2069 = vpack.c.b16 %v2055, %v2054
      %v2070 = vpack.c.b16 %v2057, %v2056
      %v2071 = vpack.c.b16 %v2059, %v2058
      %v2072 = vpack.c.b16 %v2061, %v2060
      %v2073 = vpack.c.b16 %v2063, %v2062
      %v2074 = vpack.c.b16 %v2065, %v2064
      %v2075 = vpack.c.b16 %v2067, %v2066
      %2084 = vmatprep.subr.bf16.mxu0 0
      %2085 = vmatpush1.bf16.msra.mxu0 %v2075
      %2086 = vmatprep.subr.bf16.mxu0 0
      %2087 = vmatpush1.bf16.msra.mxu0 %v2074
      %2088 = vmatprep.subr.bf16.mxu0 0
      %2089 = vmatpush1.bf16.msra.mxu0 %v2073
      %2090 = vmatprep.subr.bf16.mxu0 0
      %2091 = vmatpush1.bf16.msra.mxu0 %v2072
      %2092 = vmatprep.subr.bf16.mxu0 0
      %2093 = vmatpush1.bf16.msra.mxu0 %v2071
      %2094 = vmatprep.subr.bf16.mxu0 0
      %2095 = vmatpush1.bf16.msra.mxu0 %v2070
      %2096 = vmatprep.subr.bf16.mxu0 0
      %2097 = vmatpush1.bf16.msra.mxu0 %v2069
      %2098 = vmatprep.subr.bf16.mxu0 0
      %2099 = vmatpush1.bf16.msra.mxu0 %v2068
      %2100 = vmatprep.subr.bf16.mxu0 0
      %2101 = vmatpush2.bf16.msra.mxu0 0
      %2102 = vmatprep.subr.bf16.mxu0 0
      %2103 = vmatpush2.bf16.msra.mxu0 0
      %2104 = vmatprep.subr.bf16.mxu0 0
      %2105 = vmatpush2.bf16.msra.mxu0 0
      %2106 = vmatprep.subr.bf16.mxu0 0
      %2107 = vmatpush2.bf16.msra.mxu0 0
      %2108 = vmatprep.subr.bf16.mxu0 0
      %2109 = vmatpush2.bf16.msra.mxu0 0
      %2110 = vmatprep.subr.bf16.mxu0 0
      %2111 = vmatpush2.bf16.msra.mxu0 0
      %2112 = vmatprep.subr.bf16.mxu0 0
      %2113 = vmatpush2.bf16.msra.mxu0 0
      %2114 = vmatprep.subr.bf16.mxu0 0
      %2115 = vmatpush2.bf16.msra.mxu0 0
      %2116 = vmatprep.mubr.bf16.mxu0 0
      %2117 = vmatmul.mubr.bf16.gmra.mxu0 %v2019
      %v2118 = vpop.f32.mrf.mxu0
      %v2119 = vadd.f32 0.0, %v2118
      %v2120 = vpop.f32.mrf.mxu0
      %v2121 = vpop.f32.mrf.mxu0
      %v2122 = vadd.f32 0.0, %v2121
      %v2123 = vpop.f32.mrf.mxu0
      %2124 = vdwg.mxu0
      %v2125 = vadd.f32 %v1804, %v2119
      %v2126 = vadd.f32 %v1805, %v2122
      %v2127 = vld [vmem:[%s755] sm:$0x1]
      %v2129 = vlaneseq
      %v2130 = vshrl.u32 %v2129, 7
      %v2131 = vsub.s32 0, %v2130
      %v2132 = vrot.slane %v2127, %v2131
      %v2134 = vadd.f32 %v2125, %v2132
      %v2135 = vadd.f32 %v2126, %v2132
      %2136 = vst [vmem:[#allocation2] sm:$0xff] %v2134
      %2137 = vst [vmem:[#allocation2 + $0x8] sm:$0xff] %v2135
      %p2138 = scmp.eq.s32.totalorder %s33, 1
      // Predicated region
      $region93: #{dino_wrapper_forward.1} parent=87 // pred_check
        %p2139 = pneg %p2138
      $region94: #{dino_wrapper_forward.1} parent=87 // pred_check_branch
        %2141 = sbr.rel (%p2139) target = $region96
      $region95: #{dino_wrapper_forward.1} parent=87 // pred_region
        %v2142 = vld [vmem:[%s15] sm:$0x1]
        %v2143 = vld [vmem:[%s16] sm:$0x1]
        %2144 = vadd.xlane.f32.xlu0 %v2134
        %v2145 = vpop.xlane.xlu0 %2144
        %2146 = vadd.xlane.f32.xlu0 %v2135
        %v2147 = vpop.xlane.xlu0 %2146
        %v2148 = vmul.f32 %v2145, 0.03125
        %v2149 = vmul.f32 %v2147, 0.03125
        %v2150 = vsub.f32 %v2134, %v2148
        %v2151 = vsub.f32 %v2135, %v2149
        %v2152 = vmul.f32 %v2150, %v959
        %v2153 = vmul.f32 %v2151, %v959
        %v2154 = vmul.f32 %v2152, %v2152
        %v2155 = vmul.f32 %v2153, %v2153
        %2156 = vadd.xlane.f32.xlu0 %v2154
        %v2157 = vpop.xlane.xlu0 %2156
        %2158 = vadd.xlane.f32.xlu0 %v2155
        %v2159 = vpop.xlane.xlu0 %2158
        %v2160 = vmul.f32 %v2157, 0.03125
        %v2161 = vmul.f32 %v2159, 0.03125
        %v2162 = vadd.f32 %v2160, 1e-12
        %v2163 = vadd.f32 %v2161, 1e-12
        %v2164 = vrsqrt.pop %v2162
        %v2165 = vrsqrt.pop %v2163
        %v2166 = vmul.f32 %v2152, %v2164
        %v2167 = vmul.f32 %v2153, %v2165
        %v2169 = vlaneseq
        %v2170 = vshrl.u32 %v2169, 7
        %v2171 = vsub.s32 0, %v2170
        %v2172 = vrot.slane %v2142, %v2171
        %v2174 = vmul.f32 %v2166, %v2172
        %v2175 = vmul.f32 %v2167, %v2172
        %v2177 = vlaneseq
        %v2178 = vshrl.u32 %v2177, 7
        %v2179 = vsub.s32 0, %v2178
        %v2180 = vrot.slane %v2143, %v2179
        %v2182 = vadd.f32 %v2174, %v2180
        %v2183 = vadd.f32 %v2175, %v2180
        %2184 = vst [vmem:[%s760] sm:$0xff] %v2182
        %2185 = vst [vmem:[%s760 + $0x8] sm:$0xff] %v2183
      $region96: #{dino_wrapper_forward.1} parent=87 // pred_fallthru
        _
      %s2186 = smul.u32 2, %s32
      %p2187 = scmp.lt.s32.totalorder %s2186, 3
      %s2188 = scalar_select %p2187, %s2186, 3
      %s2189 = smul.addr %s2188, 8
      %s2190 = scalar_lea.vmem %s17, %s2189
      // Predicated region
      $region97: #{dino_wrapper_forward.1} parent=87 // pred_check
        %p2191 = pneg %p480
      $region98: #{dino_wrapper_forward.1} parent=87 // pred_check_branch
        %2193 = sbr.rel (%p2191) target = $region100
      $region99: #{dino_wrapper_forward.1} parent=87 // pred_region
        %s2194 = smul.u32 2, %s32
      $region100: #{dino_wrapper_forward.1} parent=87 // pred_fallthru
        _
    $region88: #{dino_wrapper_forward.1} parent=5 // pred_fallthru
      _
    %p2195 = scmp.le.s32.totalorder 2, %s23
    // Predicated region
    $region101: #{dino_wrapper_forward.1} parent=5 // pred_check
      %p2196 = pneg %p2195
    $region102: #{dino_wrapper_forward.1} parent=5 // pred_check_branch
      %2198 = sbr.rel (%p2196) target = $region104
    $region103: #{dino_wrapper_forward.1} parent=5 // pred_region
      %s2199 = ssub.s32 %s23, 2
      // Predicated region
      $region105: #{dino_wrapper_forward.1} parent=103 // pred_check
        %p2200 = pneg %p486
      $region106: #{dino_wrapper_forward.1} parent=103 // pred_check_branch
        %2202 = sbr.rel (%p2200) target = $region108
      $region107: #{dino_wrapper_forward.1} parent=103 // pred_region
        %s2203 = smul.u32 2, %s34
        %p2204 = scmp.lt.s32.totalorder %s2203, 3
        %s2205 = scalar_select %p2204, %s2203, 3
        %s2206 = smul.addr %s2205, 8
        %s2207 = scalar_lea.vmem %s17, %s2206
      $region108: #{dino_wrapper_forward.1} parent=103 // pred_fallthru
        _
    $region104: #{dino_wrapper_forward.1} parent=5 // pred_fallthru
      _
  $region6: #{dino_wrapper_forward.1} parent=0 // loop_footer
    %s27 = sadd.s32 1, %s23
  $region7: #{dino_wrapper_forward.1} parent=0 // loop_footer_branch
    %22 = sbr.rel target = $region3
  $region8: #{dino_wrapper_forward.1} parent=0 // loop_exit
    _

</llo_original>
